<compile_context>
chip_gen: v7x
topology: tpu7x:2x2x1
jax: 0.10.0
libtpu: 0.0.40
codegen_flags: <defaults>
</compile_context>

<pallas_src>
import functools

import jax
import jax.numpy as jnp
from jax.experimental import pallas as pl
from jax.experimental.pallas import tpu as pltpu


def _double_conv_kernel(x_ref, w1_ref, b1_ref, w2_ref, b2_ref, o_ref):
    # x_ref: (C_in, ts) tile -- channels on sublanes, spatial (lane-dense) on lanes.
    x = x_ref[...].astype(jnp.float32)

    # Conv1 (1x1x1): BN scale already folded into weight rows; add shift, ReLU.
    h = jnp.dot(w1_ref[...], x, preferred_element_type=jnp.float32)   # (C_mid, ts)
    h = jnp.maximum(h + b1_ref[...], 0.0)

    # Conv2 (1x1x1): folded BN, shift, ReLU.
    y = jnp.dot(w2_ref[...], h, preferred_element_type=jnp.float32)   # (C_out, ts)
    y = jnp.maximum(y + b2_ref[...], 0.0)

    o_ref[...] = y.astype(o_ref.dtype)


def _pick_tile(s, cap=2048):
    """Largest lane-dense tile along the flattened spatial axis (multiple of 128 or full S)."""
    if s <= cap:
        return s          # full-extent block: always a legal block shape
    return cap            # cap is a multiple of 128; any tail block is masked by Pallas


@functools.partial(jax.jit, static_argnames=("ts",))
def double_conv(x, params, *, ts=None):
    """x: (N, C_in, D, H, W) float32. Returns (N, C_out, D, H, W). BN in inference mode."""
    (w1, g1, be1, rm1, rv1, w2, g2, be2, rm2, rv2) = params
    eps = 1e-5

    n, c_in, d, h, w = x.shape
    c_mid = w1.shape[0]
    c_out = w2.shape[0]
    s = d * h * w

    # Fold eval-mode BatchNorm into the conv weights (row scale) + per-channel shift (host side).
    s1 = g1 / jnp.sqrt(rv1 + eps)
    s2 = g2 / jnp.sqrt(rv2 + eps)
    w1f = w1.reshape(c_mid, c_in) * s1[:, None]        # (C_mid, C_in)
    w2f = w2.reshape(c_out, c_mid) * s2[:, None]       # (C_out, C_mid)
    b1f = (be1 - rm1 * s1).reshape(c_mid, 1)
    b2f = (be2 - rm2 * s2).reshape(c_out, 1)

    # NCDHW -> (N, C, S): free reshape, no transpose; S becomes the lane axis.
    x3 = x.reshape(n, c_in, s)

    if ts is None:
        ts = _pick_tile(s)
    n_s = pl.cdiv(s, ts)
    # v7x has 2 TensorCores: keep >= 2 parallel grid steps when the problem allows it.
    if n * n_s < 2 and s % 256 == 0:
        ts = s // 2
        n_s = 2

    # Advisory cost hint: memory-bound, tiny FLOP count.
    flops = 2 * n * s * (c_in * c_mid + c_mid * c_out)
    bytes_accessed = 4 * (
        n * s * (c_in + c_out) + c_in * c_mid + c_mid * c_out + c_mid + c_out
    )
    cost = pl.CostEstimate(flops=flops, transcendentals=0, bytes_accessed=bytes_accessed)

    out3 = pl.pallas_call(
        _double_conv_kernel,
        out_shape=jax.ShapeDtypeStruct((n, c_out, s), x.dtype),
        grid_spec=pltpu.PrefetchScalarGridSpec(
            num_scalar_prefetch=0,
            grid=(n, n_s),
            in_specs=[
                pl.BlockSpec((None, c_in, ts), lambda b, j: (b, 0, j)),   # x tile (batch squeezed)
                pl.BlockSpec((c_mid, c_in), lambda b, j: (0, 0)),         # W1 (BN scale folded)
                pl.BlockSpec((c_mid, 1), lambda b, j: (0, 0)),            # shift1
                pl.BlockSpec((c_out, c_mid), lambda b, j: (0, 0)),        # W2 (BN scale folded)
                pl.BlockSpec((c_out, 1), lambda b, j: (0, 0)),            # shift2
            ],
            out_specs=pl.BlockSpec((None, c_out, ts), lambda b, j: (b, 0, j)),
        ),
        compiler_params=pltpu.CompilerParams(
            dimension_semantics=("parallel", "parallel"),
        ),
        cost_estimate=cost,
    )(x3, w1f, b1f, w2f, b2f)

    # (N, C_out, S) -> NCDHW: another free reshape, no transpose.
    return out3.reshape(n, c_out, d, h, w)


def _reference(x, params):
    (w1, g1, be1, rm1, rv1, w2, g2, be2, rm2, rv2) = params
    eps = 1e-5

    def bn(y, g, b, rm, rv):
        shp = (1, -1, 1, 1, 1)
        return (y - rm.reshape(shp)) / jnp.sqrt(rv.reshape(shp) + eps) * g.reshape(shp) + b.reshape(shp)

    h = jnp.einsum("ncdhw,mc->nmdhw", x, w1.reshape(w1.shape[0], w1.shape[1]))
    h = jnp.maximum(bn(h, g1, be1, rm1, rv1), 0.0)
    y = jnp.einsum("ncdhw,mc->nmdhw", h, w2.reshape(w2.shape[0], w2.shape[1]))
    y = jnp.maximum(bn(y, g2, be2, rm2, rv2), 0.0)
    return y


if __name__ == "__main__":
    key = jax.random.PRNGKey(0)
    k_x, k_w1, k_w2, k_g1, k_b1, k_rm1, k_rv1, k_g2, k_b2, k_rm2, k_rv2 = jax.random.split(key, 11)

    # Small shapes: N=2, C_in=4, D=8, H=W=16, mid=out=16 (mid_channels defaults to out_channels).
    N, C_IN, C_OUT, D, H, W = 2, 4, 16, 8, 16, 16
    C_MID = C_OUT

    x = jax.random.normal(k_x, (N, C_IN, D, H, W), dtype=jnp.float32)

    w1 = jax.random.normal(k_w1, (C_MID, C_IN, 1, 1, 1), dtype=jnp.float32) * 0.2
    w2 = jax.random.normal(k_w2, (C_OUT, C_MID, 1, 1, 1), dtype=jnp.float32) * 0.2
    g1 = 1.0 + 0.1 * jax.random.normal(k_g1, (C_MID,), dtype=jnp.float32)
    be1 = 0.1 * jax.random.normal(k_b1, (C_MID,), dtype=jnp.float32)
    rm1 = 0.1 * jax.random.normal(k_rm1, (C_MID,), dtype=jnp.float32)
    rv1 = 1.0 + 0.1 * jax.random.uniform(k_rv1, (C_MID,), dtype=jnp.float32)
    g2 = 1.0 + 0.1 * jax.random.normal(k_g2, (C_OUT,), dtype=jnp.float32)
    be2 = 0.1 * jax.random.normal(k_b2, (C_OUT,), dtype=jnp.float32)
    rm2 = 0.1 * jax.random.normal(k_rm2, (C_OUT,), dtype=jnp.float32)
    rv2 = 1.0 + 0.1 * jax.random.uniform(k_rv2, (C_OUT,), dtype=jnp.float32)

    params = (w1.reshape(C_MID, C_IN, 1, 1, 1), g1, be1, rm1, rv1,
              w2.reshape(C_OUT, C_MID, 1, 1, 1), g2, be2, rm2, rv2)

    out = double_conv(x, params)
    out = jax.block_until_ready(out)

    ref = _reference(x, params)
    assert out.shape == (N, C_OUT, D, H, W)
    assert jnp.allclose(out, ref, atol=1e-4, rtol=1e-4), float(jnp.max(jnp.abs(out - ref)))

    print("KERNEL_OK")
</pallas_src>

<mosaic_0001>
module attributes {stable_mosaic.version = 11 : i64} {
  func.func @_double_conv_kernel(%arg0: i32, %arg1: i32, %arg2: memref<1x4x2048xf32, #tpu.memory_space<vmem>>, %arg3: memref<16x4xf32, #tpu.memory_space<vmem>>, %arg4: memref<16x1xf32, #tpu.memory_space<vmem>>, %arg5: memref<16x16xf32, #tpu.memory_space<vmem>>, %arg6: memref<16x1xf32, #tpu.memory_space<vmem>>, %arg7: memref<1x16x2048xf32, #tpu.memory_space<vmem>>) attributes {dimension_semantics = [#tpu.dimension_semantics<parallel>, #tpu.dimension_semantics<parallel>], iteration_bounds = array<i64: 2, 1>, scalar_prefetch = 0 : i64, scratch_operands = 0 : i64, tpu.core_type = #tpu.core_type<tc>, window_params = [{transform_indices = @transform_0, window_bounds = array<i64: 1, 4, 2048>}, {pipeline_mode = #tpu.pipeline_mode<synchronous>, transform_indices = @transform_1, window_bounds = array<i64: 16, 4>}, {pipeline_mode = #tpu.pipeline_mode<synchronous>, transform_indices = @transform_2, window_bounds = array<i64: 16, 1>}, {pipeline_mode = #tpu.pipeline_mode<synchronous>, transform_indices = @transform_3, window_bounds = array<i64: 16, 16>}, {pipeline_mode = #tpu.pipeline_mode<synchronous>, transform_indices = @transform_4, window_bounds = array<i64: 16, 1>}, {transform_indices = @transform_5, window_bounds = array<i64: 1, 16, 2048>}]} {
    %c0 = arith.constant 0 : index
    %c0_0 = arith.constant 0 : index
    %c0_1 = arith.constant 0 : index
    %0 = vector.load %arg2[%c0, %c0_0, %c0_1] : memref<1x4x2048xf32, #tpu.memory_space<vmem>>, vector<1x4x2048xf32>
    %1 = vector.shape_cast %0 : vector<1x4x2048xf32> to vector<4x2048xf32>
    %c0_2 = arith.constant 0 : index
    %c0_3 = arith.constant 0 : index
    %2 = vector.load %arg3[%c0_2, %c0_3] : memref<16x4xf32, #tpu.memory_space<vmem>>, vector<16x4xf32>
    %cst = arith.constant dense<0.000000e+00> : vector<16x2048xf32>
    %3 = tpu.matmul %2, %1, %cst {dimension_numbers = #tpu.dot_dimension_numbers<[1], [0], [0], [1], [0, 0, 1, 1], [], []>} : vector<16x4xf32>, vector<4x2048xf32>, vector<16x2048xf32> -> vector<16x2048xf32>
    %c0_4 = arith.constant 0 : index
    %c0_5 = arith.constant 0 : index
    %4 = vector.load %arg4[%c0_4, %c0_5] : memref<16x1xf32, #tpu.memory_space<vmem>>, vector<16x1xf32>
    %5 = vector.broadcast %4 : vector<16x1xf32> to vector<16x2048xf32>
    %6 = arith.addf %3, %5 : vector<16x2048xf32>
    %cst_6 = arith.constant 0.000000e+00 : f32
    %7 = vector.broadcast %cst_6 : f32 to vector<16x2048xf32>
    %8 = arith.maximumf %6, %7 : vector<16x2048xf32>
    %c0_7 = arith.constant 0 : index
    %c0_8 = arith.constant 0 : index
    %9 = vector.load %arg5[%c0_7, %c0_8] : memref<16x16xf32, #tpu.memory_space<vmem>>, vector<16x16xf32>
    %cst_9 = arith.constant dense<0.000000e+00> : vector<16x2048xf32>
    %10 = tpu.matmul %9, %8, %cst_9 {dimension_numbers = #tpu.dot_dimension_numbers<[1], [0], [0], [1], [0, 0, 1, 1], [], []>} : vector<16x16xf32>, vector<16x2048xf32>, vector<16x2048xf32> -> vector<16x2048xf32>
    %c0_10 = arith.constant 0 : index
    %c0_11 = arith.constant 0 : index
    %11 = vector.load %arg6[%c0_10, %c0_11] : memref<16x1xf32, #tpu.memory_space<vmem>>, vector<16x1xf32>
    %12 = vector.broadcast %11 : vector<16x1xf32> to vector<16x2048xf32>
    %13 = arith.addf %10, %12 : vector<16x2048xf32>
    %cst_12 = arith.constant 0.000000e+00 : f32
    %14 = vector.broadcast %cst_12 : f32 to vector<16x2048xf32>
    %15 = arith.maximumf %13, %14 : vector<16x2048xf32>
    %c0_13 = arith.constant 0 : index
    %c0_14 = arith.constant 0 : index
    %c0_15 = arith.constant 0 : index
    %16 = vector.load %arg7[%c0_13, %c0_14, %c0_15] : memref<1x16x2048xf32, #tpu.memory_space<vmem>>, vector<1x16x2048xf32>
    %17 = vector.shape_cast %16 : vector<1x16x2048xf32> to vector<16x2048xf32>
    %18 = vector.shape_cast %15 : vector<16x2048xf32> to vector<1x16x2048xf32>
    tpu.vector_store %arg7[%c0_13, %c0_14, %c0_15], %18 {strides = array<i32>} : memref<1x16x2048xf32, #tpu.memory_space<vmem>>, vector<1x16x2048xf32>,
    return
  }
  func.func @transform_0(%arg0: i32, %arg1: i32) -> (i32, i32, i32) {
    %c0_i32 = arith.constant 0 : i32
    %c0_i32_0 = arith.constant 0 : i32
    return %arg0, %c0_i32, %arg1 : i32, i32, i32
  }
  func.func @transform_1(%arg0: i32, %arg1: i32) -> (i32, i32) {
    %c0_i32 = arith.constant 0 : i32
    %c0_i32_0 = arith.constant 0 : i32
    %c0_i32_1 = arith.constant 0 : i32
    return %c0_i32, %c0_i32_0 : i32, i32
  }
  func.func @transform_2(%arg0: i32, %arg1: i32) -> (i32, i32) {
    %c0_i32 = arith.constant 0 : i32
    %c0_i32_0 = arith.constant 0 : i32
    %c0_i32_1 = arith.constant 0 : i32
    return %c0_i32, %c0_i32_0 : i32, i32
  }
  func.func @transform_3(%arg0: i32, %arg1: i32) -> (i32, i32) {
    %c0_i32 = arith.constant 0 : i32
    %c0_i32_0 = arith.constant 0 : i32
    %c0_i32_1 = arith.constant 0 : i32
    return %c0_i32, %c0_i32_0 : i32, i32
  }
  func.func @transform_4(%arg0: i32, %arg1: i32) -> (i32, i32) {
    %c0_i32 = arith.constant 0 : i32
    %c0_i32_0 = arith.constant 0 : i32
    %c0_i32_1 = arith.constant 0 : i32
    return %c0_i32, %c0_i32_0 : i32, i32
  }
  func.func @transform_5(%arg0: i32, %arg1: i32) -> (i32, i32, i32) {
    %c0_i32 = arith.constant 0 : i32
    %c0_i32_0 = arith.constant 0 : i32
    return %arg0, %c0_i32, %arg1 : i32, i32, i32
  }
}

</mosaic_0001>

<llo_original>
// kernel: double_conv.1
$region0: #{double_conv.1}
  #allocation0 [shape = 'u32[]', space=smem, size = 0x4, offset = 0x4, fixed_abs, tag = 'smem constant byte address 0x4 - core index']
  #allocation1 [shape = 'u32[144,128]{1,0:T(1,128)}', space=vmem, size = 0x12000, scoped, tag = 'internal scratch']
  %s0 = inlined_call_operand.vmem [shape: f32[2,4,2048], index: 0, kind: input, shape index: {}]
  %s1 = inlined_call_operand.vmem [shape: f32[16,4], index: 1, kind: input, shape index: {}]
  %s2 = inlined_call_operand.vmem [shape: f32[16,1], index: 2, kind: input, shape index: {}]
  %s3 = inlined_call_operand.vmem [shape: f32[16,16], index: 3, kind: input, shape index: {}]
  %s4 = inlined_call_operand.vmem [shape: f32[16,1], index: 4, kind: input, shape index: {}]
  %s5 = inlined_call_operand.vmem [shape: f32[2,16,2048], index: 5, kind: output, shape index: {}]
  %s6 = sld [smem:[#allocation0]]
  $region53: #{double_conv.1} parent=0
    _
  %s8 = ssub.s32 1, %s6
  %s9 = scalar_select 0, %s8, %s6
  loop: start=0, step=1, limit=4
  $region2: #{double_conv.1} parent=0 // loop_pre_header
    _
  $region3: #{double_conv.1} parent=0 // loop_header
    %s11 = sphi 0, %s15
    %p12 = scmp.ge.s32.totalorder %s11, 4
    %s18 = sphi 0, %s30
    %s19 = sphi 0, %s26
    %s20 = sphi 0, %s18
    %s21 = sphi 0, %s19
    %s22 = sphi 0, %s20
    %s23 = sphi 0, %s21
    %s35 = sphi 0, %s37
    %s38 = sphi 0, %s35
    %s39 = sphi 0, %s38
    %s55 = sphi 0, %s39
    %s59 = sphi 0, %s59
    %s61 = sphi 0, %s59
    %s62 = sphi 0, %s61
    %s76 = sphi 0, %s62
    %s80 = sphi 0, %s80
    %s82 = sphi 0, %s80
    %s83 = sphi 0, %s82
    %s97 = sphi 0, %s83
    %s101 = sphi 0, %s101
    %s103 = sphi 0, %s101
    %s104 = sphi 0, %s103
    %s118 = sphi 0, %s104
    %s122 = sphi 0, %s122
    %s124 = sphi 0, %s122
    %s125 = sphi 0, %s124
    %s139 = sphi 0, %s125
    %s147 = sphi 0, %s149
    %s150 = sphi 0, %s147
    %s151 = sphi 0, %s150
    %s167 = sphi 0, %s151
  $region4: #{double_conv.1} parent=0 // loop_header_branch
    %14 = sbr.rel (%p12) target = $region8
  $region5: #{double_conv.1} parent=0 // loop_body
    %s16 = ssub.s32 %s11, 1
    %s17 = ssub.s32 %s11, 2
    %s24 = sadd.s32 1, %s19
    %p25 = scmp.ge.s32.totalorder %s24, 1
    %s26 = scalar_select %p25, 0, %s24
    %s27 = sadd.s32 1, %s18
    %s28 = scalar_select %p25, %s27, %s18
    %p29 = scmp.ge.s32.totalorder %s28, 2
    %s30 = scalar_select %p29, 0, %s28
    %s31 = ssub.s32 %s18, %s30
    %s32 = ssub.s32 %s19, %s26
    %s33 = sor.u32 %s31, %s32
    %p34 = scmp.eq.s32.totalorder %s33, 0
    %s36 = sadd.s32 %s35, 1
    %s37 = scalar_select %p34, %s35, %s36
    %p40 = pneg %p34
    %p41 = scmp.eq.s32.totalorder %s11, 1
    %p42 = por %p40, %p41
    %p43 = scmp.ne.s32.totalorder %s35, %s38
    %p44 = scmp.eq.s32.totalorder %s11, 0
    %p45 = por %p43, %p44
    %p46 = scmp.ne.s32.totalorder %s35, %s38
    %p47 = scmp.eq.s32.totalorder %s16, 1
    %p48 = por %p46, %p47
    %p49 = scmp.ne.s32.totalorder %s38, %s39
    %p50 = scmp.eq.s32.totalorder %s16, 0
    %p51 = por %p49, %p50
    %p52 = scmp.ne.s32.totalorder %s38, %s39
    %p53 = scmp.eq.s32.totalorder %s17, 1
    %p54 = por %p52, %p53
    %p56 = scmp.ne.s32.totalorder %s39, %s55
    %p57 = scmp.eq.s32.totalorder %s17, 0
    %p58 = por %p56, %p57
    %s60 = sadd.s32 %s59, 1
    %p63 = scmp.eq.s32.totalorder %s11, 1
    %p64 = scmp.ne.s32.totalorder %s59, %s61
    %p65 = scmp.eq.s32.totalorder %s11, 0
    %p66 = por %p64, %p65
    %p67 = scmp.ne.s32.totalorder %s59, %s61
    %p68 = scmp.eq.s32.totalorder %s16, 1
    %p69 = por %p67, %p68
    %p70 = scmp.ne.s32.totalorder %s61, %s62
    %p71 = scmp.eq.s32.totalorder %s16, 0
    %p72 = por %p70, %p71
    %p73 = scmp.ne.s32.totalorder %s61, %s62
    %p74 = scmp.eq.s32.totalorder %s17, 1
    %p75 = por %p73, %p74
    %p77 = scmp.ne.s32.totalorder %s62, %s76
    %p78 = scmp.eq.s32.totalorder %s17, 0
    %p79 = por %p77, %p78
    %s81 = sadd.s32 %s80, 1
    %p84 = scmp.eq.s32.totalorder %s11, 1
    %p85 = scmp.ne.s32.totalorder %s80, %s82
    %p86 = scmp.eq.s32.totalorder %s11, 0
    %p87 = por %p85, %p86
    %p88 = scmp.ne.s32.totalorder %s80, %s82
    %p89 = scmp.eq.s32.totalorder %s16, 1
    %p90 = por %p88, %p89
    %p91 = scmp.ne.s32.totalorder %s82, %s83
    %p92 = scmp.eq.s32.totalorder %s16, 0
    %p93 = por %p91, %p92
    %p94 = scmp.ne.s32.totalorder %s82, %s83
    %p95 = scmp.eq.s32.totalorder %s17, 1
    %p96 = por %p94, %p95
    %p98 = scmp.ne.s32.totalorder %s83, %s97
    %p99 = scmp.eq.s32.totalorder %s17, 0
    %p100 = por %p98, %p99
    %s102 = sadd.s32 %s101, 1
    %p105 = scmp.eq.s32.totalorder %s11, 1
    %p106 = scmp.ne.s32.totalorder %s101, %s103
    %p107 = scmp.eq.s32.totalorder %s11, 0
    %p108 = por %p106, %p107
    %p109 = scmp.ne.s32.totalorder %s101, %s103
    %p110 = scmp.eq.s32.totalorder %s16, 1
    %p111 = por %p109, %p110
    %p112 = scmp.ne.s32.totalorder %s103, %s104
    %p113 = scmp.eq.s32.totalorder %s16, 0
    %p114 = por %p112, %p113
    %p115 = scmp.ne.s32.totalorder %s103, %s104
    %p116 = scmp.eq.s32.totalorder %s17, 1
    %p117 = por %p115, %p116
    %p119 = scmp.ne.s32.totalorder %s104, %s118
    %p120 = scmp.eq.s32.totalorder %s17, 0
    %p121 = por %p119, %p120
    %s123 = sadd.s32 %s122, 1
    %p126 = scmp.eq.s32.totalorder %s11, 1
    %p127 = scmp.ne.s32.totalorder %s122, %s124
    %p128 = scmp.eq.s32.totalorder %s11, 0
    %p129 = por %p127, %p128
    %p130 = scmp.ne.s32.totalorder %s122, %s124
    %p131 = scmp.eq.s32.totalorder %s16, 1
    %p132 = por %p130, %p131
    %p133 = scmp.ne.s32.totalorder %s124, %s125
    %p134 = scmp.eq.s32.totalorder %s16, 0
    %p135 = por %p133, %p134
    %p136 = scmp.ne.s32.totalorder %s124, %s125
    %p137 = scmp.eq.s32.totalorder %s17, 1
    %p138 = por %p136, %p137
    %p140 = scmp.ne.s32.totalorder %s125, %s139
    %p141 = scmp.eq.s32.totalorder %s17, 0
    %p142 = por %p140, %p141
    %s143 = ssub.s32 %s18, %s30
    %s144 = ssub.s32 %s19, %s26
    %s145 = sor.u32 %s143, %s144
    %p146 = scmp.eq.s32.totalorder %s145, 0
    %s148 = sadd.s32 %s147, 1
    %s149 = scalar_select %p146, %s147, %s148
    %p152 = pneg %p146
    %p153 = scmp.eq.s32.totalorder %s11, 1
    %p154 = por %p152, %p153
    %p155 = scmp.ne.s32.totalorder %s147, %s150
    %p156 = scmp.eq.s32.totalorder %s11, 0
    %p157 = por %p155, %p156
    %p158 = scmp.ne.s32.totalorder %s147, %s150
    %p159 = scmp.eq.s32.totalorder %s16, 1
    %p160 = por %p158, %p159
    %p161 = scmp.ne.s32.totalorder %s150, %s151
    %p162 = scmp.eq.s32.totalorder %s16, 0
    %p163 = por %p161, %p162
    %p164 = scmp.ne.s32.totalorder %s150, %s151
    %p165 = scmp.eq.s32.totalorder %s17, 1
    %p166 = por %p164, %p165
    %p168 = scmp.ne.s32.totalorder %s151, %s167
    %p169 = scmp.eq.s32.totalorder %s17, 0
    %p170 = por %p168, %p169
    %p171 = scmp.le.s32.totalorder 1, %s11
    %p172 = scmp.lt.s32.totalorder %s11, 3
    %p173 = pnand %p171, %p172
    %p174 = pneg %p173
    // Predicated region
    $region9: #{double_conv.1} parent=5 // pred_check
      _
    $region10: #{double_conv.1} parent=5 // pred_check_branch
      %176 = sbr.rel (%p173) target = $region12
    $region11: #{double_conv.1} parent=5 // pred_region
      %s177 = ssub.s32 %s11, 1
      // Predicated region
      $region13: #{double_conv.1} parent=11 // pred_check
        %p178 = pneg %p72
      $region14: #{double_conv.1} parent=11 // pred_check_branch
        %180 = sbr.rel (%p178) target = $region16
      $region15: #{double_conv.1} parent=11 // pred_region
        _
      $region16: #{double_conv.1} parent=11 // pred_fallthru
        _
      // Predicated region
      $region17: #{double_conv.1} parent=11 // pred_check
        %p181 = pneg %p93
      $region18: #{double_conv.1} parent=11 // pred_check_branch
        %183 = sbr.rel (%p181) target = $region20
      $region19: #{double_conv.1} parent=11 // pred_region
        _
      $region20: #{double_conv.1} parent=11 // pred_fallthru
        _
      // Predicated region
      $region21: #{double_conv.1} parent=11 // pred_check
        %p184 = pneg %p114
      $region22: #{double_conv.1} parent=11 // pred_check_branch
        %186 = sbr.rel (%p184) target = $region24
      $region23: #{double_conv.1} parent=11 // pred_region
        _
      $region24: #{double_conv.1} parent=11 // pred_fallthru
        _
      // Predicated region
      $region25: #{double_conv.1} parent=11 // pred_check
        %p187 = pneg %p135
      $region26: #{double_conv.1} parent=11 // pred_check_branch
        %189 = sbr.rel (%p187) target = $region28
      $region27: #{double_conv.1} parent=11 // pred_region
        _
      $region28: #{double_conv.1} parent=11 // pred_fallthru
        _
    $region12: #{double_conv.1} parent=5 // pred_fallthru
      _
    %p190 = scmp.lt.s32.totalorder %s11, 2
    // Predicated region
    $region29: #{double_conv.1} parent=5 // pred_check
      %p191 = pneg %p190
    $region30: #{double_conv.1} parent=5 // pred_check_branch
      %193 = sbr.rel (%p191) target = $region32
    $region31: #{double_conv.1} parent=5 // pred_region
      // Predicated region
      $region33: #{double_conv.1} parent=31 // pred_check
        %p194 = pneg %p45
      $region34: #{double_conv.1} parent=31 // pred_check_branch
        %196 = sbr.rel (%p194) target = $region36
      $region35: #{double_conv.1} parent=31 // pred_region
        %s197 = smul.u32 16, %s19
        %p198 = scmp.lt.s32.totalorder %s18, 1
        %s199 = scalar_select %p198, %s18, 1
        %p200 = scmp.lt.s32.totalorder %s197, 15
        %s201 = scalar_select %p200, %s197, 15
        %s202 = smul.addr %s199, 16
        %s203 = sadd.s32 %s201, %s202
        %s204 = smul.addr %s203, 4
        %s205 = scalar_lea.vmem %s0, %s204
        %s206 = smul.u32 16, %s19
      $region36: #{double_conv.1} parent=31 // pred_fallthru
        _
    $region32: #{double_conv.1} parent=5 // pred_fallthru
      _
    %p207 = scmp.le.s32.totalorder 1, %s11
    %p208 = scmp.lt.s32.totalorder %s11, 3
    %p209 = pnand %p207, %p208
    %p210 = pneg %p209
    // Predicated region
    $region37: #{double_conv.1} parent=5 // pred_check
      _
    $region38: #{double_conv.1} parent=5 // pred_check_branch
      %212 = sbr.rel (%p209) target = $region40
    $region39: #{double_conv.1} parent=5 // pred_region
      %s213 = ssub.s32 %s11, 1
      %s214 = smul.u32 16, %s21
      %p215 = scmp.lt.s32.totalorder %s20, 1
      %s216 = scalar_select %p215, %s20, 1
      %p217 = scmp.lt.s32.totalorder %s214, 15
      %s218 = scalar_select %p217, %s214, 15
      %s219 = smul.addr %s216, 16
      %s220 = sadd.s32 %s218, %s219
      %s221 = smul.addr %s220, 4
      %s222 = scalar_lea.vmem %s0, %s221
      %p223 = pneg %p51
      %p224 = pneg %p48
      %p225 = pneg %p72
      %p226 = pneg %p69
      %p227 = pneg %p93
      %p228 = pneg %p90
      %p229 = pneg %p114
      %p230 = pneg %p111
      %p231 = pneg %p135
      %p232 = pneg %p132
      %p233 = pneg %p163
      %p234 = pneg %p160
      %s235 = smul.u32 16, %s21
      %p236 = scmp.lt.s32.totalorder %s20, 1
      %s237 = scalar_select %p236, %s20, 1
      %p238 = scmp.lt.s32.totalorder %s235, 15
      %s239 = scalar_select %p238, %s235, 15
      %s240 = smul.addr %s237, 32
      %s241 = sadd.s32 %s239, %s240
      %s242 = smul.addr %s241, 8
      %s243 = scalar_lea.vmem %s5, %s242
      %s244 = smul.u32 16, %s21
      %p245 = scmp.lt.s32.totalorder %s20, 1
      %s246 = scalar_select %p245, %s20, 1
      %p247 = scmp.lt.s32.totalorder %s244, 15
      %s248 = scalar_select %p247, %s244, 15
      %s249 = smul.addr %s246, 16
      %s250 = sadd.s32 %s248, %s249
      %s251 = smul.addr %s250, 4
      %s252 = scalar_lea.vmem %s0, %s251
      %s253 = smul.u32 16, %s21
      %s254 = smul.u32 16, %s21
      %p255 = scmp.lt.s32.totalorder %s20, 1
      %s256 = scalar_select %p255, %s20, 1
      %p257 = scmp.lt.s32.totalorder %s254, 15
      %s258 = scalar_select %p257, %s254, 15
      %s259 = smul.addr %s256, 32
      %s260 = sadd.s32 %s258, %s259
      %s261 = smul.addr %s260, 8
      %s262 = scalar_lea.vmem %s5, %s261
      %s263 = smul.u32 16, %s21
      %v264 = vld [vmem:[%s252] sm:$0xff]
      %v265 = vld [vmem:[%s252 + $0x8] sm:$0xff]
      %v266 = vld [vmem:[%s252 + $0x10] sm:$0xff]
      %v267 = vld [vmem:[%s252 + $0x18] sm:$0xff]
      %v268 = vld [vmem:[%s252 + $0x20] sm:$0xff]
      %v269 = vld [vmem:[%s252 + $0x28] sm:$0xff]
      %v270 = vld [vmem:[%s252 + $0x30] sm:$0xff]
      %v271 = vld [vmem:[%s252 + $0x38] sm:$0xff]
      %v272 = vld [vmem:[%s1] sm:$0xff]
      %v273 = vld [vmem:[%s1 + $0x8] sm:$0xff]
      %v274 = vld [vmem:[%s2] sm:$0xff]
      %v275 = vld [vmem:[%s2 + $0x8] sm:$0xff]
      %277 = vset.pattern.permute.xlu0 0
      %278 = vperm.xlu0 %277, %v274
      %v279 = vpop.permute.xlu0 %278
      %282 = vset.pattern.permute.xlu0 0
      %283 = vperm.xlu0 %282, %v275
      %v284 = vpop.permute.xlu0 %283
      %v294 = vcombine.high %v264, %v264
      %v295 = vcombine.high %v265, %v265
      %v296 = vcombine.high %v266, %v266
      %v297 = vcombine.high %v267, %v267
      %v298 = vcombine.high %v268, %v268
      %v299 = vcombine.high %v269, %v269
      %v300 = vcombine.high %v270, %v270
      %v301 = vcombine.high %v271, %v271
      %vm302 = vcmask 31744
      %v304 = vsel %vm302, %v272, 0
      %v307 = vsel %vm302, %v273, 0
      %vm309 = vcmask 1043456
      %v310 = vsel %vm309, %v264, 0
      %v312 = vsel %vm309, %v294, 0
      %v314 = vsel %vm309, %v265, 0
      %v316 = vsel %vm309, %v295, 0
      %v318 = vsel %vm309, %v266, 0
      %v320 = vsel %vm309, %v296, 0
      %v322 = vsel %vm309, %v267, 0
      %v324 = vsel %vm309, %v297, 0
      %v326 = vsel %vm309, %v268, 0
      %v328 = vsel %vm309, %v298, 0
      %v330 = vsel %vm309, %v269, 0
      %v332 = vsel %vm309, %v299, 0
      %v334 = vsel %vm309, %v270, 0
      %v336 = vsel %vm309, %v300, 0
      %v338 = vsel %vm309, %v271, 0
      %v340 = vsel %vm309, %v301, 0
      %342 = vmatprep.subr.mxu0 %v312
      %343 = vmatpush1.msra.mxu0 %v310
      %344 = vmatprep.subr.mxu0 0.0
      %345 = vmatpush1.msra.mxu0 0.0
      %346 = vmatprep.subr.mxu0 0.0
      %347 = vmatpush1.msra.mxu0 0.0
      %348 = vmatprep.subr.mxu0 0.0
      %349 = vmatpush1.msra.mxu0 0.0
      %350 = vmatprep.subr.mxu0 0.0
      %351 = vmatpush1.msra.mxu0 0.0
      %352 = vmatprep.subr.mxu0 0.0
      %353 = vmatpush1.msra.mxu0 0.0
      %354 = vmatprep.subr.mxu0 0.0
      %355 = vmatpush1.msra.mxu0 0.0
      %356 = vmatprep.subr.mxu0 0.0
      %357 = vmatpush1.msra.mxu0 0.0
      %358 = vmatprep.subr.mxu0 0.0
      %359 = vmatpush1.msra.mxu0 0.0
      %360 = vmatprep.subr.mxu0 0.0
      %361 = vmatpush1.msra.mxu0 0.0
      %362 = vmatprep.subr.mxu0 0.0
      %363 = vmatpush1.msra.mxu0 0.0
      %364 = vmatprep.subr.mxu0 0.0
      %365 = vmatpush1.msra.mxu0 0.0
      %366 = vmatprep.subr.mxu0 0.0
      %367 = vmatpush1.msra.mxu0 0.0
      %368 = vmatprep.subr.mxu0 0.0
      %369 = vmatpush1.msra.mxu0 0.0
      %370 = vmatprep.subr.mxu0 0.0
      %371 = vmatpush1.msra.mxu0 0.0
      %372 = vmatprep.subr.mxu0 0.0
      %373 = vmatpush1.msra.mxu0 0.0
      %374 = vmatprep.subr.mxu0 0.0
      %375 = vmatpush1.msra.mxu0 0.0
      %376 = vmatprep.subr.mxu0 0.0
      %377 = vmatpush1.msra.mxu0 0.0
      %378 = vmatprep.subr.mxu0 0.0
      %379 = vmatpush1.msra.mxu0 0.0
      %380 = vmatprep.subr.mxu0 0.0
      %381 = vmatpush1.msra.mxu0 0.0
      %382 = vmatprep.subr.mxu0 0.0
      %383 = vmatpush1.msra.mxu0 0.0
      %384 = vmatprep.subr.mxu0 0.0
      %385 = vmatpush1.msra.mxu0 0.0
      %386 = vmatprep.subr.mxu0 0.0
      %387 = vmatpush1.msra.mxu0 0.0
      %388 = vmatprep.subr.mxu0 0.0
      %389 = vmatpush1.msra.mxu0 0.0
      %390 = vmatprep.subr.mxu0 0.0
      %391 = vmatpush1.msra.mxu0 0.0
      %392 = vmatprep.subr.mxu0 0.0
      %393 = vmatpush1.msra.mxu0 0.0
      %394 = vmatprep.subr.mxu0 0.0
      %395 = vmatpush1.msra.mxu0 0.0
      %396 = vmatprep.subr.mxu0 0.0
      %397 = vmatpush1.msra.mxu0 0.0
      %398 = vmatprep.subr.mxu0 0.0
      %399 = vmatpush1.msra.mxu0 0.0
      %400 = vmatprep.subr.mxu0 0.0
      %401 = vmatpush1.msra.mxu0 0.0
      %402 = vmatprep.subr.mxu0 0.0
      %403 = vmatpush1.msra.mxu0 0.0
      %404 = vmatprep.subr.mxu0 0.0
      %405 = vmatpush1.msra.mxu0 0.0
      %406 = vmatprep.mubr.f32.mxu0 0.0
      %407 = vmatmul.mubr.f32.gmra.mrb[0].mxu0 %v304
      %v408 = vpop.f32.mrb[0].mxu0
      %v409 = vadd.f32 %v279, %v408
      %v410 = vpop.f32.mrb[0].mxu0
      %v411 = vadd.f32 %v279, %v410
      %412 = vmatprep.mubr.f32.mxu0 0.0
      %413 = vmatmul.mubr.f32.gmra.mrb[0].mxu0 %v307
      %v414 = vpop.f32.mrb[0].mxu0
      %v415 = vadd.f32 %v284, %v414
      %v416 = vpop.f32.mrb[0].mxu0
      %v417 = vadd.f32 %v284, %v416
      %418 = vdwg.mxu0
      %419 = vmatprep.subr.mxu0 %v316
      %420 = vmatpush1.msra.mxu0 %v314
      %421 = vmatprep.subr.mxu0 0.0
      %422 = vmatpush1.msra.mxu0 0.0
      %423 = vmatprep.subr.mxu0 0.0
      %424 = vmatpush1.msra.mxu0 0.0
      %425 = vmatprep.subr.mxu0 0.0
      %426 = vmatpush1.msra.mxu0 0.0
      %427 = vmatprep.subr.mxu0 0.0
      %428 = vmatpush1.msra.mxu0 0.0
      %429 = vmatprep.subr.mxu0 0.0
      %430 = vmatpush1.msra.mxu0 0.0
      %431 = vmatprep.subr.mxu0 0.0
      %432 = vmatpush1.msra.mxu0 0.0
      %433 = vmatprep.subr.mxu0 0.0
      %434 = vmatpush1.msra.mxu0 0.0
      %435 = vmatprep.subr.mxu0 0.0
      %436 = vmatpush1.msra.mxu0 0.0
      %437 = vmatprep.subr.mxu0 0.0
      %438 = vmatpush1.msra.mxu0 0.0
      %439 = vmatprep.subr.mxu0 0.0
      %440 = vmatpush1.msra.mxu0 0.0
      %441 = vmatprep.subr.mxu0 0.0
      %442 = vmatpush1.msra.mxu0 0.0
      %443 = vmatprep.subr.mxu0 0.0
      %444 = vmatpush1.msra.mxu0 0.0
      %445 = vmatprep.subr.mxu0 0.0
      %446 = vmatpush1.msra.mxu0 0.0
      %447 = vmatprep.subr.mxu0 0.0
      %448 = vmatpush1.msra.mxu0 0.0
      %449 = vmatprep.subr.mxu0 0.0
      %450 = vmatpush1.msra.mxu0 0.0
      %451 = vmatprep.subr.mxu0 0.0
      %452 = vmatpush1.msra.mxu0 0.0
      %453 = vmatprep.subr.mxu0 0.0
      %454 = vmatpush1.msra.mxu0 0.0
      %455 = vmatprep.subr.mxu0 0.0
      %456 = vmatpush1.msra.mxu0 0.0
      %457 = vmatprep.subr.mxu0 0.0
      %458 = vmatpush1.msra.mxu0 0.0
      %459 = vmatprep.subr.mxu0 0.0
      %460 = vmatpush1.msra.mxu0 0.0
      %461 = vmatprep.subr.mxu0 0.0
      %462 = vmatpush1.msra.mxu0 0.0
      %463 = vmatprep.subr.mxu0 0.0
      %464 = vmatpush1.msra.mxu0 0.0
      %465 = vmatprep.subr.mxu0 0.0
      %466 = vmatpush1.msra.mxu0 0.0
      %467 = vmatprep.subr.mxu0 0.0
      %468 = vmatpush1.msra.mxu0 0.0
      %469 = vmatprep.subr.mxu0 0.0
      %470 = vmatpush1.msra.mxu0 0.0
      %471 = vmatprep.subr.mxu0 0.0
      %472 = vmatpush1.msra.mxu0 0.0
      %473 = vmatprep.subr.mxu0 0.0
      %474 = vmatpush1.msra.mxu0 0.0
      %475 = vmatprep.subr.mxu0 0.0
      %476 = vmatpush1.msra.mxu0 0.0
      %477 = vmatprep.subr.mxu0 0.0
      %478 = vmatpush1.msra.mxu0 0.0
      %479 = vmatprep.subr.mxu0 0.0
      %480 = vmatpush1.msra.mxu0 0.0
      %481 = vmatprep.subr.mxu0 0.0
      %482 = vmatpush1.msra.mxu0 0.0
      %483 = vmatprep.mubr.f32.mxu0 0.0
      %484 = vmatmul.mubr.f32.gmra.mrb[0].mxu0 %v304
      %v485 = vpop.f32.mrb[0].mxu0
      %v486 = vadd.f32 %v279, %v485
      %v487 = vpop.f32.mrb[0].mxu0
      %v488 = vadd.f32 %v279, %v487
      %489 = vmatprep.mubr.f32.mxu0 0.0
      %490 = vmatmul.mubr.f32.gmra.mrb[0].mxu0 %v307
      %v491 = vpop.f32.mrb[0].mxu0
      %v492 = vadd.f32 %v284, %v491
      %v493 = vpop.f32.mrb[0].mxu0
      %v494 = vadd.f32 %v284, %v493
      %495 = vdwg.mxu0
      %496 = vmatprep.subr.mxu0 %v320
      %497 = vmatpush1.msra.mxu0 %v318
      %498 = vmatprep.subr.mxu0 0.0
      %499 = vmatpush1.msra.mxu0 0.0
      %500 = vmatprep.subr.mxu0 0.0
      %501 = vmatpush1.msra.mxu0 0.0
      %502 = vmatprep.subr.mxu0 0.0
      %503 = vmatpush1.msra.mxu0 0.0
      %504 = vmatprep.subr.mxu0 0.0
      %505 = vmatpush1.msra.mxu0 0.0
      %506 = vmatprep.subr.mxu0 0.0
      %507 = vmatpush1.msra.mxu0 0.0
      %508 = vmatprep.subr.mxu0 0.0
      %509 = vmatpush1.msra.mxu0 0.0
      %510 = vmatprep.subr.mxu0 0.0
      %511 = vmatpush1.msra.mxu0 0.0
      %512 = vmatprep.subr.mxu0 0.0
      %513 = vmatpush1.msra.mxu0 0.0
      %514 = vmatprep.subr.mxu0 0.0
      %515 = vmatpush1.msra.mxu0 0.0
      %516 = vmatprep.subr.mxu0 0.0
      %517 = vmatpush1.msra.mxu0 0.0
      %518 = vmatprep.subr.mxu0 0.0
      %519 = vmatpush1.msra.mxu0 0.0
      %520 = vmatprep.subr.mxu0 0.0
      %521 = vmatpush1.msra.mxu0 0.0
      %522 = vmatprep.subr.mxu0 0.0
      %523 = vmatpush1.msra.mxu0 0.0
      %524 = vmatprep.subr.mxu0 0.0
      %525 = vmatpush1.msra.mxu0 0.0
      %526 = vmatprep.subr.mxu0 0.0
      %527 = vmatpush1.msra.mxu0 0.0
      %528 = vmatprep.subr.mxu0 0.0
      %529 = vmatpush1.msra.mxu0 0.0
      %530 = vmatprep.subr.mxu0 0.0
      %531 = vmatpush1.msra.mxu0 0.0
      %532 = vmatprep.subr.mxu0 0.0
      %533 = vmatpush1.msra.mxu0 0.0
      %534 = vmatprep.subr.mxu0 0.0
      %535 = vmatpush1.msra.mxu0 0.0
      %536 = vmatprep.subr.mxu0 0.0
      %537 = vmatpush1.msra.mxu0 0.0
      %538 = vmatprep.subr.mxu0 0.0
      %539 = vmatpush1.msra.mxu0 0.0
      %540 = vmatprep.subr.mxu0 0.0
      %541 = vmatpush1.msra.mxu0 0.0
      %542 = vmatprep.subr.mxu0 0.0
      %543 = vmatpush1.msra.mxu0 0.0
      %544 = vmatprep.subr.mxu0 0.0
      %545 = vmatpush1.msra.mxu0 0.0
      %546 = vmatprep.subr.mxu0 0.0
      %547 = vmatpush1.msra.mxu0 0.0
      %548 = vmatprep.subr.mxu0 0.0
      %549 = vmatpush1.msra.mxu0 0.0
      %550 = vmatprep.subr.mxu0 0.0
      %551 = vmatpush1.msra.mxu0 0.0
      %552 = vmatprep.subr.mxu0 0.0
      %553 = vmatpush1.msra.mxu0 0.0
      %554 = vmatprep.subr.mxu0 0.0
      %555 = vmatpush1.msra.mxu0 0.0
      %556 = vmatprep.subr.mxu0 0.0
      %557 = vmatpush1.msra.mxu0 0.0
      %558 = vmatprep.subr.mxu0 0.0
      %559 = vmatpush1.msra.mxu0 0.0
      %560 = vmatprep.mubr.f32.mxu0 0.0
      %561 = vmatmul.mubr.f32.gmra.mrb[0].mxu0 %v304
      %v562 = vpop.f32.mrb[0].mxu0
      %v563 = vadd.f32 %v279, %v562
      %v564 = vpop.f32.mrb[0].mxu0
      %v565 = vadd.f32 %v279, %v564
      %566 = vmatprep.mubr.f32.mxu0 0.0
      %567 = vmatmul.mubr.f32.gmra.mrb[0].mxu0 %v307
      %v568 = vpop.f32.mrb[0].mxu0
      %v569 = vadd.f32 %v284, %v568
      %v570 = vpop.f32.mrb[0].mxu0
      %v571 = vadd.f32 %v284, %v570
      %572 = vdwg.mxu0
      %573 = vmatprep.subr.mxu0 %v324
      %574 = vmatpush1.msra.mxu0 %v322
      %575 = vmatprep.subr.mxu0 0.0
      %576 = vmatpush1.msra.mxu0 0.0
      %577 = vmatprep.subr.mxu0 0.0
      %578 = vmatpush1.msra.mxu0 0.0
      %579 = vmatprep.subr.mxu0 0.0
      %580 = vmatpush1.msra.mxu0 0.0
      %581 = vmatprep.subr.mxu0 0.0
      %582 = vmatpush1.msra.mxu0 0.0
      %583 = vmatprep.subr.mxu0 0.0
      %584 = vmatpush1.msra.mxu0 0.0
      %585 = vmatprep.subr.mxu0 0.0
      %586 = vmatpush1.msra.mxu0 0.0
      %587 = vmatprep.subr.mxu0 0.0
      %588 = vmatpush1.msra.mxu0 0.0
      %589 = vmatprep.subr.mxu0 0.0
      %590 = vmatpush1.msra.mxu0 0.0
      %591 = vmatprep.subr.mxu0 0.0
      %592 = vmatpush1.msra.mxu0 0.0
      %593 = vmatprep.subr.mxu0 0.0
      %594 = vmatpush1.msra.mxu0 0.0
      %595 = vmatprep.subr.mxu0 0.0
      %596 = vmatpush1.msra.mxu0 0.0
      %597 = vmatprep.subr.mxu0 0.0
      %598 = vmatpush1.msra.mxu0 0.0
      %599 = vmatprep.subr.mxu0 0.0
      %600 = vmatpush1.msra.mxu0 0.0
      %601 = vmatprep.subr.mxu0 0.0
      %602 = vmatpush1.msra.mxu0 0.0
      %603 = vmatprep.subr.mxu0 0.0
      %604 = vmatpush1.msra.mxu0 0.0
      %605 = vmatprep.subr.mxu0 0.0
      %606 = vmatpush1.msra.mxu0 0.0
      %607 = vmatprep.subr.mxu0 0.0
      %608 = vmatpush1.msra.mxu0 0.0
      %609 = vmatprep.subr.mxu0 0.0
      %610 = vmatpush1.msra.mxu0 0.0
      %611 = vmatprep.subr.mxu0 0.0
      %612 = vmatpush1.msra.mxu0 0.0
      %613 = vmatprep.subr.mxu0 0.0
      %614 = vmatpush1.msra.mxu0 0.0
      %615 = vmatprep.subr.mxu0 0.0
      %616 = vmatpush1.msra.mxu0 0.0
      %617 = vmatprep.subr.mxu0 0.0
      %618 = vmatpush1.msra.mxu0 0.0
      %619 = vmatprep.subr.mxu0 0.0
      %620 = vmatpush1.msra.mxu0 0.0
      %621 = vmatprep.subr.mxu0 0.0
      %622 = vmatpush1.msra.mxu0 0.0
      %623 = vmatprep.subr.mxu0 0.0
      %624 = vmatpush1.msra.mxu0 0.0
      %625 = vmatprep.subr.mxu0 0.0
      %626 = vmatpush1.msra.mxu0 0.0
      %627 = vmatprep.subr.mxu0 0.0
      %628 = vmatpush1.msra.mxu0 0.0
      %629 = vmatprep.subr.mxu0 0.0
      %630 = vmatpush1.msra.mxu0 0.0
      %631 = vmatprep.subr.mxu0 0.0
      %632 = vmatpush1.msra.mxu0 0.0
      %633 = vmatprep.subr.mxu0 0.0
      %634 = vmatpush1.msra.mxu0 0.0
      %635 = vmatprep.subr.mxu0 0.0
      %636 = vmatpush1.msra.mxu0 0.0
      %637 = vmatprep.mubr.f32.mxu0 0.0
      %638 = vmatmul.mubr.f32.gmra.mrb[0].mxu0 %v304
      %v639 = vpop.f32.mrb[0].mxu0
      %v640 = vadd.f32 %v279, %v639
      %v641 = vpop.f32.mrb[0].mxu0
      %v642 = vadd.f32 %v279, %v641
      %643 = vmatprep.mubr.f32.mxu0 0.0
      %644 = vmatmul.mubr.f32.gmra.mrb[0].mxu0 %v307
      %v645 = vpop.f32.mrb[0].mxu0
      %v646 = vadd.f32 %v284, %v645
      %v647 = vpop.f32.mrb[0].mxu0
      %v648 = vadd.f32 %v284, %v647
      %649 = vdwg.mxu0
      %650 = vmatprep.subr.mxu0 %v328
      %651 = vmatpush1.msra.mxu0 %v326
      %652 = vmatprep.subr.mxu0 0.0
      %653 = vmatpush1.msra.mxu0 0.0
      %654 = vmatprep.subr.mxu0 0.0
      %655 = vmatpush1.msra.mxu0 0.0
      %656 = vmatprep.subr.mxu0 0.0
      %657 = vmatpush1.msra.mxu0 0.0
      %658 = vmatprep.subr.mxu0 0.0
      %659 = vmatpush1.msra.mxu0 0.0
      %660 = vmatprep.subr.mxu0 0.0
      %661 = vmatpush1.msra.mxu0 0.0
      %662 = vmatprep.subr.mxu0 0.0
      %663 = vmatpush1.msra.mxu0 0.0
      %664 = vmatprep.subr.mxu0 0.0
      %665 = vmatpush1.msra.mxu0 0.0
      %666 = vmatprep.subr.mxu0 0.0
      %667 = vmatpush1.msra.mxu0 0.0
      %668 = vmatprep.subr.mxu0 0.0
      %669 = vmatpush1.msra.mxu0 0.0
      %670 = vmatprep.subr.mxu0 0.0
      %671 = vmatpush1.msra.mxu0 0.0
      %672 = vmatprep.subr.mxu0 0.0
      %673 = vmatpush1.msra.mxu0 0.0
      %674 = vmatprep.subr.mxu0 0.0
      %675 = vmatpush1.msra.mxu0 0.0
      %676 = vmatprep.subr.mxu0 0.0
      %677 = vmatpush1.msra.mxu0 0.0
      %678 = vmatprep.subr.mxu0 0.0
      %679 = vmatpush1.msra.mxu0 0.0
      %680 = vmatprep.subr.mxu0 0.0
      %681 = vmatpush1.msra.mxu0 0.0
      %682 = vmatprep.subr.mxu0 0.0
      %683 = vmatpush1.msra.mxu0 0.0
      %684 = vmatprep.subr.mxu0 0.0
      %685 = vmatpush1.msra.mxu0 0.0
      %686 = vmatprep.subr.mxu0 0.0
      %687 = vmatpush1.msra.mxu0 0.0
      %688 = vmatprep.subr.mxu0 0.0
      %689 = vmatpush1.msra.mxu0 0.0
      %690 = vmatprep.subr.mxu0 0.0
      %691 = vmatpush1.msra.mxu0 0.0
      %692 = vmatprep.subr.mxu0 0.0
      %693 = vmatpush1.msra.mxu0 0.0
      %694 = vmatprep.subr.mxu0 0.0
      %695 = vmatpush1.msra.mxu0 0.0
      %696 = vmatprep.subr.mxu0 0.0
      %697 = vmatpush1.msra.mxu0 0.0
      %698 = vmatprep.subr.mxu0 0.0
      %699 = vmatpush1.msra.mxu0 0.0
      %700 = vmatprep.subr.mxu0 0.0
      %701 = vmatpush1.msra.mxu0 0.0
      %702 = vmatprep.subr.mxu0 0.0
      %703 = vmatpush1.msra.mxu0 0.0
      %704 = vmatprep.subr.mxu0 0.0
      %705 = vmatpush1.msra.mxu0 0.0
      %706 = vmatprep.subr.mxu0 0.0
      %707 = vmatpush1.msra.mxu0 0.0
      %708 = vmatprep.subr.mxu0 0.0
      %709 = vmatpush1.msra.mxu0 0.0
      %710 = vmatprep.subr.mxu0 0.0
      %711 = vmatpush1.msra.mxu0 0.0
      %712 = vmatprep.subr.mxu0 0.0
      %713 = vmatpush1.msra.mxu0 0.0
      %714 = vmatprep.mubr.f32.mxu0 0.0
      %715 = vmatmul.mubr.f32.gmra.mrb[0].mxu0 %v304
      %v716 = vpop.f32.mrb[0].mxu0
      %v717 = vadd.f32 %v279, %v716
      %v718 = vpop.f32.mrb[0].mxu0
      %v719 = vadd.f32 %v279, %v718
      %720 = vmatprep.mubr.f32.mxu0 0.0
      %721 = vmatmul.mubr.f32.gmra.mrb[0].mxu0 %v307
      %v722 = vpop.f32.mrb[0].mxu0
      %v723 = vadd.f32 %v284, %v722
      %v724 = vpop.f32.mrb[0].mxu0
      %v725 = vadd.f32 %v284, %v724
      %726 = vdwg.mxu0
      %727 = vmatprep.subr.mxu0 %v332
      %728 = vmatpush1.msra.mxu0 %v330
      %729 = vmatprep.subr.mxu0 0.0
      %730 = vmatpush1.msra.mxu0 0.0
      %731 = vmatprep.subr.mxu0 0.0
      %732 = vmatpush1.msra.mxu0 0.0
      %733 = vmatprep.subr.mxu0 0.0
      %734 = vmatpush1.msra.mxu0 0.0
      %735 = vmatprep.subr.mxu0 0.0
      %736 = vmatpush1.msra.mxu0 0.0
      %737 = vmatprep.subr.mxu0 0.0
      %738 = vmatpush1.msra.mxu0 0.0
      %739 = vmatprep.subr.mxu0 0.0
      %740 = vmatpush1.msra.mxu0 0.0
      %741 = vmatprep.subr.mxu0 0.0
      %742 = vmatpush1.msra.mxu0 0.0
      %743 = vmatprep.subr.mxu0 0.0
      %744 = vmatpush1.msra.mxu0 0.0
      %745 = vmatprep.subr.mxu0 0.0
      %746 = vmatpush1.msra.mxu0 0.0
      %747 = vmatprep.subr.mxu0 0.0
      %748 = vmatpush1.msra.mxu0 0.0
      %749 = vmatprep.subr.mxu0 0.0
      %750 = vmatpush1.msra.mxu0 0.0
      %751 = vmatprep.subr.mxu0 0.0
      %752 = vmatpush1.msra.mxu0 0.0
      %753 = vmatprep.subr.mxu0 0.0
      %754 = vmatpush1.msra.mxu0 0.0
      %755 = vmatprep.subr.mxu0 0.0
      %756 = vmatpush1.msra.mxu0 0.0
      %757 = vmatprep.subr.mxu0 0.0
      %758 = vmatpush1.msra.mxu0 0.0
      %759 = vmatprep.subr.mxu0 0.0
      %760 = vmatpush1.msra.mxu0 0.0
      %761 = vmatprep.subr.mxu0 0.0
      %762 = vmatpush1.msra.mxu0 0.0
      %763 = vmatprep.subr.mxu0 0.0
      %764 = vmatpush1.msra.mxu0 0.0
      %765 = vmatprep.subr.mxu0 0.0
      %766 = vmatpush1.msra.mxu0 0.0
      %767 = vmatprep.subr.mxu0 0.0
      %768 = vmatpush1.msra.mxu0 0.0
      %769 = vmatprep.subr.mxu0 0.0
      %770 = vmatpush1.msra.mxu0 0.0
      %771 = vmatprep.subr.mxu0 0.0
      %772 = vmatpush1.msra.mxu0 0.0
      %773 = vmatprep.subr.mxu0 0.0
      %774 = vmatpush1.msra.mxu0 0.0
      %775 = vmatprep.subr.mxu0 0.0
      %776 = vmatpush1.msra.mxu0 0.0
      %777 = vmatprep.subr.mxu0 0.0
      %778 = vmatpush1.msra.mxu0 0.0
      %779 = vmatprep.subr.mxu0 0.0
      %780 = vmatpush1.msra.mxu0 0.0
      %781 = vmatprep.subr.mxu0 0.0
      %782 = vmatpush1.msra.mxu0 0.0
      %783 = vmatprep.subr.mxu0 0.0
      %784 = vmatpush1.msra.mxu0 0.0
      %785 = vmatprep.subr.mxu0 0.0
      %786 = vmatpush1.msra.mxu0 0.0
      %787 = vmatprep.subr.mxu0 0.0
      %788 = vmatpush1.msra.mxu0 0.0
      %789 = vmatprep.subr.mxu0 0.0
      %790 = vmatpush1.msra.mxu0 0.0
      %791 = vmatprep.mubr.f32.mxu0 0.0
      %792 = vmatmul.mubr.f32.gmra.mrb[0].mxu0 %v304
      %v793 = vpop.f32.mrb[0].mxu0
      %v794 = vadd.f32 %v279, %v793
      %v795 = vpop.f32.mrb[0].mxu0
      %v796 = vadd.f32 %v279, %v795
      %797 = vmatprep.mubr.f32.mxu0 0.0
      %798 = vmatmul.mubr.f32.gmra.mrb[0].mxu0 %v307
      %v799 = vpop.f32.mrb[0].mxu0
      %v800 = vadd.f32 %v284, %v799
      %v801 = vpop.f32.mrb[0].mxu0
      %v802 = vadd.f32 %v284, %v801
      %803 = vdwg.mxu0
      %804 = vmatprep.subr.mxu0 %v336
      %805 = vmatpush1.msra.mxu0 %v334
      %806 = vmatprep.subr.mxu0 0.0
      %807 = vmatpush1.msra.mxu0 0.0
      %808 = vmatprep.subr.mxu0 0.0
      %809 = vmatpush1.msra.mxu0 0.0
      %810 = vmatprep.subr.mxu0 0.0
      %811 = vmatpush1.msra.mxu0 0.0
      %812 = vmatprep.subr.mxu0 0.0
      %813 = vmatpush1.msra.mxu0 0.0
      %814 = vmatprep.subr.mxu0 0.0
      %815 = vmatpush1.msra.mxu0 0.0
      %816 = vmatprep.subr.mxu0 0.0
      %817 = vmatpush1.msra.mxu0 0.0
      %818 = vmatprep.subr.mxu0 0.0
      %819 = vmatpush1.msra.mxu0 0.0
      %820 = vmatprep.subr.mxu0 0.0
      %821 = vmatpush1.msra.mxu0 0.0
      %822 = vmatprep.subr.mxu0 0.0
      %823 = vmatpush1.msra.mxu0 0.0
      %824 = vmatprep.subr.mxu0 0.0
      %825 = vmatpush1.msra.mxu0 0.0
      %826 = vmatprep.subr.mxu0 0.0
      %827 = vmatpush1.msra.mxu0 0.0
      %828 = vmatprep.subr.mxu0 0.0
      %829 = vmatpush1.msra.mxu0 0.0
      %830 = vmatprep.subr.mxu0 0.0
      %831 = vmatpush1.msra.mxu0 0.0
      %832 = vmatprep.subr.mxu0 0.0
      %833 = vmatpush1.msra.mxu0 0.0
      %834 = vmatprep.subr.mxu0 0.0
      %835 = vmatpush1.msra.mxu0 0.0
      %836 = vmatprep.subr.mxu0 0.0
      %837 = vmatpush1.msra.mxu0 0.0
      %838 = vmatprep.subr.mxu0 0.0
      %839 = vmatpush1.msra.mxu0 0.0
      %840 = vmatprep.subr.mxu0 0.0
      %841 = vmatpush1.msra.mxu0 0.0
      %842 = vmatprep.subr.mxu0 0.0
      %843 = vmatpush1.msra.mxu0 0.0
      %844 = vmatprep.subr.mxu0 0.0
      %845 = vmatpush1.msra.mxu0 0.0
      %846 = vmatprep.subr.mxu0 0.0
      %847 = vmatpush1.msra.mxu0 0.0
      %848 = vmatprep.subr.mxu0 0.0
      %849 = vmatpush1.msra.mxu0 0.0
      %850 = vmatprep.subr.mxu0 0.0
      %851 = vmatpush1.msra.mxu0 0.0
      %852 = vmatprep.subr.mxu0 0.0
      %853 = vmatpush1.msra.mxu0 0.0
      %854 = vmatprep.subr.mxu0 0.0
      %855 = vmatpush1.msra.mxu0 0.0
      %856 = vmatprep.subr.mxu0 0.0
      %857 = vmatpush1.msra.mxu0 0.0
      %858 = vmatprep.subr.mxu0 0.0
      %859 = vmatpush1.msra.mxu0 0.0
      %860 = vmatprep.subr.mxu0 0.0
      %861 = vmatpush1.msra.mxu0 0.0
      %862 = vmatprep.subr.mxu0 0.0
      %863 = vmatpush1.msra.mxu0 0.0
      %864 = vmatprep.subr.mxu0 0.0
      %865 = vmatpush1.msra.mxu0 0.0
      %866 = vmatprep.subr.mxu0 0.0
      %867 = vmatpush1.msra.mxu0 0.0
      %868 = vmatprep.mubr.f32.mxu0 0.0
      %869 = vmatmul.mubr.f32.gmra.mrb[0].mxu0 %v304
      %v870 = vpop.f32.mrb[0].mxu0
      %v871 = vadd.f32 %v279, %v870
      %v872 = vpop.f32.mrb[0].mxu0
      %v873 = vadd.f32 %v279, %v872
      %874 = vmatprep.mubr.f32.mxu0 0.0
      %875 = vmatmul.mubr.f32.gmra.mrb[0].mxu0 %v307
      %v876 = vpop.f32.mrb[0].mxu0
      %v877 = vadd.f32 %v284, %v876
      %v878 = vpop.f32.mrb[0].mxu0
      %v879 = vadd.f32 %v284, %v878
      %880 = vdwg.mxu0
      %881 = vmatprep.subr.mxu0 %v340
      %882 = vmatpush1.msra.mxu0 %v338
      %883 = vmatprep.subr.mxu0 0.0
      %884 = vmatpush1.msra.mxu0 0.0
      %885 = vmatprep.subr.mxu0 0.0
      %886 = vmatpush1.msra.mxu0 0.0
      %887 = vmatprep.subr.mxu0 0.0
      %888 = vmatpush1.msra.mxu0 0.0
      %889 = vmatprep.subr.mxu0 0.0
      %890 = vmatpush1.msra.mxu0 0.0
      %891 = vmatprep.subr.mxu0 0.0
      %892 = vmatpush1.msra.mxu0 0.0
      %893 = vmatprep.subr.mxu0 0.0
      %894 = vmatpush1.msra.mxu0 0.0
      %895 = vmatprep.subr.mxu0 0.0
      %896 = vmatpush1.msra.mxu0 0.0
      %897 = vmatprep.subr.mxu0 0.0
      %898 = vmatpush1.msra.mxu0 0.0
      %899 = vmatprep.subr.mxu0 0.0
      %900 = vmatpush1.msra.mxu0 0.0
      %901 = vmatprep.subr.mxu0 0.0
      %902 = vmatpush1.msra.mxu0 0.0
      %903 = vmatprep.subr.mxu0 0.0
      %904 = vmatpush1.msra.mxu0 0.0
      %905 = vmatprep.subr.mxu0 0.0
      %906 = vmatpush1.msra.mxu0 0.0
      %907 = vmatprep.subr.mxu0 0.0
      %908 = vmatpush1.msra.mxu0 0.0
      %909 = vmatprep.subr.mxu0 0.0
      %910 = vmatpush1.msra.mxu0 0.0
      %911 = vmatprep.subr.mxu0 0.0
      %912 = vmatpush1.msra.mxu0 0.0
      %913 = vmatprep.subr.mxu0 0.0
      %914 = vmatpush1.msra.mxu0 0.0
      %915 = vmatprep.subr.mxu0 0.0
      %916 = vmatpush1.msra.mxu0 0.0
      %917 = vmatprep.subr.mxu0 0.0
      %918 = vmatpush1.msra.mxu0 0.0
      %919 = vmatprep.subr.mxu0 0.0
      %920 = vmatpush1.msra.mxu0 0.0
      %921 = vmatprep.subr.mxu0 0.0
      %922 = vmatpush1.msra.mxu0 0.0
      %923 = vmatprep.subr.mxu0 0.0
      %924 = vmatpush1.msra.mxu0 0.0
      %925 = vmatprep.subr.mxu0 0.0
      %926 = vmatpush1.msra.mxu0 0.0
      %927 = vmatprep.subr.mxu0 0.0
      %928 = vmatpush1.msra.mxu0 0.0
      %929 = vmatprep.subr.mxu0 0.0
      %930 = vmatpush1.msra.mxu0 0.0
      %931 = vmatprep.subr.mxu0 0.0
      %932 = vmatpush1.msra.mxu0 0.0
      %933 = vmatprep.subr.mxu0 0.0
      %934 = vmatpush1.msra.mxu0 0.0
      %935 = vmatprep.subr.mxu0 0.0
      %936 = vmatpush1.msra.mxu0 0.0
      %937 = vmatprep.subr.mxu0 0.0
      %938 = vmatpush1.msra.mxu0 0.0
      %939 = vmatprep.subr.mxu0 0.0
      %940 = vmatpush1.msra.mxu0 0.0
      %941 = vmatprep.subr.mxu0 0.0
      %942 = vmatpush1.msra.mxu0 0.0
      %943 = vmatprep.subr.mxu0 0.0
      %944 = vmatpush1.msra.mxu0 0.0
      %945 = vmatprep.mubr.f32.mxu0 0.0
      %946 = vmatmul.mubr.f32.gmra.mrb[0].mxu0 %v304
      %v947 = vpop.f32.mrb[0].mxu0
      %v948 = vadd.f32 %v279, %v947
      %v949 = vpop.f32.mrb[0].mxu0
      %v950 = vadd.f32 %v279, %v949
      %951 = vmatprep.mubr.f32.mxu0 0.0
      %952 = vmatmul.mubr.f32.gmra.mrb[0].mxu0 %v307
      %v953 = vpop.f32.mrb[0].mxu0
      %v954 = vadd.f32 %v284, %v953
      %v955 = vpop.f32.mrb[0].mxu0
      %v956 = vadd.f32 %v284, %v955
      %957 = vdwg.mxu0
      %v958 = vmax.f32 %v409, 0.0
      %v959 = vmax.f32 %v411, 0.0
      %v960 = vmax.f32 %v486, 0.0
      %v961 = vmax.f32 %v488, 0.0
      %v962 = vmax.f32 %v563, 0.0
      %v963 = vmax.f32 %v565, 0.0
      %v964 = vmax.f32 %v640, 0.0
      %v965 = vmax.f32 %v642, 0.0
      %v966 = vmax.f32 %v717, 0.0
      %v967 = vmax.f32 %v719, 0.0
      %v968 = vmax.f32 %v794, 0.0
      %v969 = vmax.f32 %v796, 0.0
      %v970 = vmax.f32 %v871, 0.0
      %v971 = vmax.f32 %v873, 0.0
      %v972 = vmax.f32 %v948, 0.0
      %v973 = vmax.f32 %v950, 0.0
      %v974 = vmax.f32 %v415, 0.0
      %v975 = vmax.f32 %v417, 0.0
      %v976 = vmax.f32 %v492, 0.0
      %v977 = vmax.f32 %v494, 0.0
      %v978 = vmax.f32 %v569, 0.0
      %v979 = vmax.f32 %v571, 0.0
      %v980 = vmax.f32 %v646, 0.0
      %v981 = vmax.f32 %v648, 0.0
      %v982 = vmax.f32 %v723, 0.0
      %v983 = vmax.f32 %v725, 0.0
      %v984 = vmax.f32 %v800, 0.0
      %v985 = vmax.f32 %v802, 0.0
      %v986 = vmax.f32 %v877, 0.0
      %v987 = vmax.f32 %v879, 0.0
      %v988 = vmax.f32 %v954, 0.0
      %v989 = vmax.f32 %v956, 0.0
      %v990 = vld [vmem:[%s3] sm:$0xff]
      %v991 = vld [vmem:[%s3 + $0x8] sm:$0xff]
      %v992 = vld [vmem:[%s4] sm:$0xff]
      %v993 = vld [vmem:[%s4 + $0x8] sm:$0xff]
      %995 = vset.pattern.permute.xlu0 0
      %996 = vperm.xlu0 %995, %v992
      %v997 = vpop.permute.xlu0 %996
      %1000 = vset.pattern.permute.xlu0 0
      %1001 = vperm.xlu0 %1000, %v993
      %v1002 = vpop.permute.xlu0 %1001
      %vm1004 = vcmask 130048
      %v1006 = vsel %vm1004, %v990, 0
      %v1009 = vsel %vm1004, %v991, 0
      %1011 = vmatprep.subr.mxu0 %v959
      %1012 = vmatpush1.msra.mxu0 %v958
      %1013 = vmatprep.subr.mxu0 %v975
      %1014 = vmatpush1.msra.mxu0 %v974
      %1015 = vmatprep.subr.mxu0 0.0
      %1016 = vmatpush1.msra.mxu0 0.0
      %1017 = vmatprep.subr.mxu0 0.0
      %1018 = vmatpush1.msra.mxu0 0.0
      %1019 = vmatprep.subr.mxu0 0.0
      %1020 = vmatpush1.msra.mxu0 0.0
      %1021 = vmatprep.subr.mxu0 0.0
      %1022 = vmatpush1.msra.mxu0 0.0
      %1023 = vmatprep.subr.mxu0 0.0
      %1024 = vmatpush1.msra.mxu0 0.0
      %1025 = vmatprep.subr.mxu0 0.0
      %1026 = vmatpush1.msra.mxu0 0.0
      %1027 = vmatprep.subr.mxu0 0.0
      %1028 = vmatpush1.msra.mxu0 0.0
      %1029 = vmatprep.subr.mxu0 0.0
      %1030 = vmatpush1.msra.mxu0 0.0
      %1031 = vmatprep.subr.mxu0 0.0
      %1032 = vmatpush1.msra.mxu0 0.0
      %1033 = vmatprep.subr.mxu0 0.0
      %1034 = vmatpush1.msra.mxu0 0.0
      %1035 = vmatprep.subr.mxu0 0.0
      %1036 = vmatpush1.msra.mxu0 0.0
      %1037 = vmatprep.subr.mxu0 0.0
      %1038 = vmatpush1.msra.mxu0 0.0
      %1039 = vmatprep.subr.mxu0 0.0
      %1040 = vmatpush1.msra.mxu0 0.0
      %1041 = vmatprep.subr.mxu0 0.0
      %1042 = vmatpush1.msra.mxu0 0.0
      %1043 = vmatprep.subr.mxu0 0.0
      %1044 = vmatpush1.msra.mxu0 0.0
      %1045 = vmatprep.subr.mxu0 0.0
      %1046 = vmatpush1.msra.mxu0 0.0
      %1047 = vmatprep.subr.mxu0 0.0
      %1048 = vmatpush1.msra.mxu0 0.0
      %1049 = vmatprep.subr.mxu0 0.0
      %1050 = vmatpush1.msra.mxu0 0.0
      %1051 = vmatprep.subr.mxu0 0.0
      %1052 = vmatpush1.msra.mxu0 0.0
      %1053 = vmatprep.subr.mxu0 0.0
      %1054 = vmatpush1.msra.mxu0 0.0
      %1055 = vmatprep.subr.mxu0 0.0
      %1056 = vmatpush1.msra.mxu0 0.0
      %1057 = vmatprep.subr.mxu0 0.0
      %1058 = vmatpush1.msra.mxu0 0.0
      %1059 = vmatprep.subr.mxu0 0.0
      %1060 = vmatpush1.msra.mxu0 0.0
      %1061 = vmatprep.subr.mxu0 0.0
      %1062 = vmatpush1.msra.mxu0 0.0
      %1063 = vmatprep.subr.mxu0 0.0
      %1064 = vmatpush1.msra.mxu0 0.0
      %1065 = vmatprep.subr.mxu0 0.0
      %1066 = vmatpush1.msra.mxu0 0.0
      %1067 = vmatprep.subr.mxu0 0.0
      %1068 = vmatpush1.msra.mxu0 0.0
      %1069 = vmatprep.subr.mxu0 0.0
      %1070 = vmatpush1.msra.mxu0 0.0
      %1071 = vmatprep.subr.mxu0 0.0
      %1072 = vmatpush1.msra.mxu0 0.0
      %1073 = vmatprep.subr.mxu0 0.0
      %1074 = vmatpush1.msra.mxu0 0.0
      %1075 = vmatprep.mubr.f32.mxu0 0.0
      %1076 = vmatmul.mubr.f32.gmra.mrb[0].mxu0 %v1006
      %v1077 = vpop.f32.mrb[0].mxu0
      %v1078 = vadd.f32 %v997, %v1077
      %v1079 = vpop.f32.mrb[0].mxu0
      %v1080 = vadd.f32 %v997, %v1079
      %1081 = vmatprep.mubr.f32.mxu0 0.0
      %1082 = vmatmul.mubr.f32.gmra.mrb[0].mxu0 %v1009
      %v1083 = vpop.f32.mrb[0].mxu0
      %v1084 = vadd.f32 %v1002, %v1083
      %v1085 = vpop.f32.mrb[0].mxu0
      %v1086 = vadd.f32 %v1002, %v1085
      %1087 = vdwg.mxu0
      %1088 = vmatprep.subr.mxu0 %v961
      %1089 = vmatpush1.msra.mxu0 %v960
      %1090 = vmatprep.subr.mxu0 %v977
      %1091 = vmatpush1.msra.mxu0 %v976
      %1092 = vmatprep.subr.mxu0 0.0
      %1093 = vmatpush1.msra.mxu0 0.0
      %1094 = vmatprep.subr.mxu0 0.0
      %1095 = vmatpush1.msra.mxu0 0.0
      %1096 = vmatprep.subr.mxu0 0.0
      %1097 = vmatpush1.msra.mxu0 0.0
      %1098 = vmatprep.subr.mxu0 0.0
      %1099 = vmatpush1.msra.mxu0 0.0
      %1100 = vmatprep.subr.mxu0 0.0
      %1101 = vmatpush1.msra.mxu0 0.0
      %1102 = vmatprep.subr.mxu0 0.0
      %1103 = vmatpush1.msra.mxu0 0.0
      %1104 = vmatprep.subr.mxu0 0.0
      %1105 = vmatpush1.msra.mxu0 0.0
      %1106 = vmatprep.subr.mxu0 0.0
      %1107 = vmatpush1.msra.mxu0 0.0
      %1108 = vmatprep.subr.mxu0 0.0
      %1109 = vmatpush1.msra.mxu0 0.0
      %1110 = vmatprep.subr.mxu0 0.0
      %1111 = vmatpush1.msra.mxu0 0.0
      %1112 = vmatprep.subr.mxu0 0.0
      %1113 = vmatpush1.msra.mxu0 0.0
      %1114 = vmatprep.subr.mxu0 0.0
      %1115 = vmatpush1.msra.mxu0 0.0
      %1116 = vmatprep.subr.mxu0 0.0
      %1117 = vmatpush1.msra.mxu0 0.0
      %1118 = vmatprep.subr.mxu0 0.0
      %1119 = vmatpush1.msra.mxu0 0.0
      %1120 = vmatprep.subr.mxu0 0.0
      %1121 = vmatpush1.msra.mxu0 0.0
      %1122 = vmatprep.subr.mxu0 0.0
      %1123 = vmatpush1.msra.mxu0 0.0
      %1124 = vmatprep.subr.mxu0 0.0
      %1125 = vmatpush1.msra.mxu0 0.0
      %1126 = vmatprep.subr.mxu0 0.0
      %1127 = vmatpush1.msra.mxu0 0.0
      %1128 = vmatprep.subr.mxu0 0.0
      %1129 = vmatpush1.msra.mxu0 0.0
      %1130 = vmatprep.subr.mxu0 0.0
      %1131 = vmatpush1.msra.mxu0 0.0
      %1132 = vmatprep.subr.mxu0 0.0
      %1133 = vmatpush1.msra.mxu0 0.0
      %1134 = vmatprep.subr.mxu0 0.0
      %1135 = vmatpush1.msra.mxu0 0.0
      %1136 = vmatprep.subr.mxu0 0.0
      %1137 = vmatpush1.msra.mxu0 0.0
      %1138 = vmatprep.subr.mxu0 0.0
      %1139 = vmatpush1.msra.mxu0 0.0
      %1140 = vmatprep.subr.mxu0 0.0
      %1141 = vmatpush1.msra.mxu0 0.0
      %1142 = vmatprep.subr.mxu0 0.0
      %1143 = vmatpush1.msra.mxu0 0.0
      %1144 = vmatprep.subr.mxu0 0.0
      %1145 = vmatpush1.msra.mxu0 0.0
      %1146 = vmatprep.subr.mxu0 0.0
      %1147 = vmatpush1.msra.mxu0 0.0
      %1148 = vmatprep.subr.mxu0 0.0
      %1149 = vmatpush1.msra.mxu0 0.0
      %1150 = vmatprep.subr.mxu0 0.0
      %1151 = vmatpush1.msra.mxu0 0.0
      %1152 = vmatprep.mubr.f32.mxu0 0.0
      %1153 = vmatmul.mubr.f32.gmra.mrb[0].mxu0 %v1006
      %v1154 = vpop.f32.mrb[0].mxu0
      %v1155 = vadd.f32 %v997, %v1154
      %v1156 = vpop.f32.mrb[0].mxu0
      %v1157 = vadd.f32 %v997, %v1156
      %1158 = vmatprep.mubr.f32.mxu0 0.0
      %1159 = vmatmul.mubr.f32.gmra.mrb[0].mxu0 %v1009
      %v1160 = vpop.f32.mrb[0].mxu0
      %v1161 = vadd.f32 %v1002, %v1160
      %v1162 = vpop.f32.mrb[0].mxu0
      %v1163 = vadd.f32 %v1002, %v1162
      %1164 = vdwg.mxu0
      %1165 = vmatprep.subr.mxu0 %v963
      %1166 = vmatpush1.msra.mxu0 %v962
      %1167 = vmatprep.subr.mxu0 %v979
      %1168 = vmatpush1.msra.mxu0 %v978
      %1169 = vmatprep.subr.mxu0 0.0
      %1170 = vmatpush1.msra.mxu0 0.0
      %1171 = vmatprep.subr.mxu0 0.0
      %1172 = vmatpush1.msra.mxu0 0.0
      %1173 = vmatprep.subr.mxu0 0.0
      %1174 = vmatpush1.msra.mxu0 0.0
      %1175 = vmatprep.subr.mxu0 0.0
      %1176 = vmatpush1.msra.mxu0 0.0
      %1177 = vmatprep.subr.mxu0 0.0
      %1178 = vmatpush1.msra.mxu0 0.0
      %1179 = vmatprep.subr.mxu0 0.0
      %1180 = vmatpush1.msra.mxu0 0.0
      %1181 = vmatprep.subr.mxu0 0.0
      %1182 = vmatpush1.msra.mxu0 0.0
      %1183 = vmatprep.subr.mxu0 0.0
      %1184 = vmatpush1.msra.mxu0 0.0
      %1185 = vmatprep.subr.mxu0 0.0
      %1186 = vmatpush1.msra.mxu0 0.0
      %1187 = vmatprep.subr.mxu0 0.0
      %1188 = vmatpush1.msra.mxu0 0.0
      %1189 = vmatprep.subr.mxu0 0.0
      %1190 = vmatpush1.msra.mxu0 0.0
      %1191 = vmatprep.subr.mxu0 0.0
      %1192 = vmatpush1.msra.mxu0 0.0
      %1193 = vmatprep.subr.mxu0 0.0
      %1194 = vmatpush1.msra.mxu0 0.0
      %1195 = vmatprep.subr.mxu0 0.0
      %1196 = vmatpush1.msra.mxu0 0.0
      %1197 = vmatprep.subr.mxu0 0.0
      %1198 = vmatpush1.msra.mxu0 0.0
      %1199 = vmatprep.subr.mxu0 0.0
      %1200 = vmatpush1.msra.mxu0 0.0
      %1201 = vmatprep.subr.mxu0 0.0
      %1202 = vmatpush1.msra.mxu0 0.0
      %1203 = vmatprep.subr.mxu0 0.0
      %1204 = vmatpush1.msra.mxu0 0.0
      %1205 = vmatprep.subr.mxu0 0.0
      %1206 = vmatpush1.msra.mxu0 0.0
      %1207 = vmatprep.subr.mxu0 0.0
      %1208 = vmatpush1.msra.mxu0 0.0
      %1209 = vmatprep.subr.mxu0 0.0
      %1210 = vmatpush1.msra.mxu0 0.0
      %1211 = vmatprep.subr.mxu0 0.0
      %1212 = vmatpush1.msra.mxu0 0.0
      %1213 = vmatprep.subr.mxu0 0.0
      %1214 = vmatpush1.msra.mxu0 0.0
      %1215 = vmatprep.subr.mxu0 0.0
      %1216 = vmatpush1.msra.mxu0 0.0
      %1217 = vmatprep.subr.mxu0 0.0
      %1218 = vmatpush1.msra.mxu0 0.0
      %1219 = vmatprep.subr.mxu0 0.0
      %1220 = vmatpush1.msra.mxu0 0.0
      %1221 = vmatprep.subr.mxu0 0.0
      %1222 = vmatpush1.msra.mxu0 0.0
      %1223 = vmatprep.subr.mxu0 0.0
      %1224 = vmatpush1.msra.mxu0 0.0
      %1225 = vmatprep.subr.mxu0 0.0
      %1226 = vmatpush1.msra.mxu0 0.0
      %1227 = vmatprep.subr.mxu0 0.0
      %1228 = vmatpush1.msra.mxu0 0.0
      %1229 = vmatprep.mubr.f32.mxu0 0.0
      %1230 = vmatmul.mubr.f32.gmra.mrb[0].mxu0 %v1006
      %v1231 = vpop.f32.mrb[0].mxu0
      %v1232 = vadd.f32 %v997, %v1231
      %v1233 = vpop.f32.mrb[0].mxu0
      %v1234 = vadd.f32 %v997, %v1233
      %1235 = vmatprep.mubr.f32.mxu0 0.0
      %1236 = vmatmul.mubr.f32.gmra.mrb[0].mxu0 %v1009
      %v1237 = vpop.f32.mrb[0].mxu0
      %v1238 = vadd.f32 %v1002, %v1237
      %v1239 = vpop.f32.mrb[0].mxu0
      %v1240 = vadd.f32 %v1002, %v1239
      %1241 = vdwg.mxu0
      %1242 = vmatprep.subr.mxu0 %v965
      %1243 = vmatpush1.msra.mxu0 %v964
      %1244 = vmatprep.subr.mxu0 %v981
      %1245 = vmatpush1.msra.mxu0 %v980
      %1246 = vmatprep.subr.mxu0 0.0
      %1247 = vmatpush1.msra.mxu0 0.0
      %1248 = vmatprep.subr.mxu0 0.0
      %1249 = vmatpush1.msra.mxu0 0.0
      %1250 = vmatprep.subr.mxu0 0.0
      %1251 = vmatpush1.msra.mxu0 0.0
      %1252 = vmatprep.subr.mxu0 0.0
      %1253 = vmatpush1.msra.mxu0 0.0
      %1254 = vmatprep.subr.mxu0 0.0
      %1255 = vmatpush1.msra.mxu0 0.0
      %1256 = vmatprep.subr.mxu0 0.0
      %1257 = vmatpush1.msra.mxu0 0.0
      %1258 = vmatprep.subr.mxu0 0.0
      %1259 = vmatpush1.msra.mxu0 0.0
      %1260 = vmatprep.subr.mxu0 0.0
      %1261 = vmatpush1.msra.mxu0 0.0
      %1262 = vmatprep.subr.mxu0 0.0
      %1263 = vmatpush1.msra.mxu0 0.0
      %1264 = vmatprep.subr.mxu0 0.0
      %1265 = vmatpush1.msra.mxu0 0.0
      %1266 = vmatprep.subr.mxu0 0.0
      %1267 = vmatpush1.msra.mxu0 0.0
      %1268 = vmatprep.subr.mxu0 0.0
      %1269 = vmatpush1.msra.mxu0 0.0
      %1270 = vmatprep.subr.mxu0 0.0
      %1271 = vmatpush1.msra.mxu0 0.0
      %1272 = vmatprep.subr.mxu0 0.0
      %1273 = vmatpush1.msra.mxu0 0.0
      %1274 = vmatprep.subr.mxu0 0.0
      %1275 = vmatpush1.msra.mxu0 0.0
      %1276 = vmatprep.subr.mxu0 0.0
      %1277 = vmatpush1.msra.mxu0 0.0
      %1278 = vmatprep.subr.mxu0 0.0
      %1279 = vmatpush1.msra.mxu0 0.0
      %1280 = vmatprep.subr.mxu0 0.0
      %1281 = vmatpush1.msra.mxu0 0.0
      %1282 = vmatprep.subr.mxu0 0.0
      %1283 = vmatpush1.msra.mxu0 0.0
      %1284 = vmatprep.subr.mxu0 0.0
      %1285 = vmatpush1.msra.mxu0 0.0
      %1286 = vmatprep.subr.mxu0 0.0
      %1287 = vmatpush1.msra.mxu0 0.0
      %1288 = vmatprep.subr.mxu0 0.0
      %1289 = vmatpush1.msra.mxu0 0.0
      %1290 = vmatprep.subr.mxu0 0.0
      %1291 = vmatpush1.msra.mxu0 0.0
      %1292 = vmatprep.subr.mxu0 0.0
      %1293 = vmatpush1.msra.mxu0 0.0
      %1294 = vmatprep.subr.mxu0 0.0
      %1295 = vmatpush1.msra.mxu0 0.0
      %1296 = vmatprep.subr.mxu0 0.0
      %1297 = vmatpush1.msra.mxu0 0.0
      %1298 = vmatprep.subr.mxu0 0.0
      %1299 = vmatpush1.msra.mxu0 0.0
      %1300 = vmatprep.subr.mxu0 0.0
      %1301 = vmatpush1.msra.mxu0 0.0
      %1302 = vmatprep.subr.mxu0 0.0
      %1303 = vmatpush1.msra.mxu0 0.0
      %1304 = vmatprep.subr.mxu0 0.0
      %1305 = vmatpush1.msra.mxu0 0.0
      %1306 = vmatprep.mubr.f32.mxu0 0.0
      %1307 = vmatmul.mubr.f32.gmra.mrb[0].mxu0 %v1006
      %v1308 = vpop.f32.mrb[0].mxu0
      %v1309 = vadd.f32 %v997, %v1308
      %v1310 = vpop.f32.mrb[0].mxu0
      %v1311 = vadd.f32 %v997, %v1310
      %1312 = vmatprep.mubr.f32.mxu0 0.0
      %1313 = vmatmul.mubr.f32.gmra.mrb[0].mxu0 %v1009
      %v1314 = vpop.f32.mrb[0].mxu0
      %v1315 = vadd.f32 %v1002, %v1314
      %v1316 = vpop.f32.mrb[0].mxu0
      %v1317 = vadd.f32 %v1002, %v1316
      %1318 = vdwg.mxu0
      %1319 = vmatprep.subr.mxu0 %v967
      %1320 = vmatpush1.msra.mxu0 %v966
      %1321 = vmatprep.subr.mxu0 %v983
      %1322 = vmatpush1.msra.mxu0 %v982
      %1323 = vmatprep.subr.mxu0 0.0
      %1324 = vmatpush1.msra.mxu0 0.0
      %1325 = vmatprep.subr.mxu0 0.0
      %1326 = vmatpush1.msra.mxu0 0.0
      %1327 = vmatprep.subr.mxu0 0.0
      %1328 = vmatpush1.msra.mxu0 0.0
      %1329 = vmatprep.subr.mxu0 0.0
      %1330 = vmatpush1.msra.mxu0 0.0
      %1331 = vmatprep.subr.mxu0 0.0
      %1332 = vmatpush1.msra.mxu0 0.0
      %1333 = vmatprep.subr.mxu0 0.0
      %1334 = vmatpush1.msra.mxu0 0.0
      %1335 = vmatprep.subr.mxu0 0.0
      %1336 = vmatpush1.msra.mxu0 0.0
      %1337 = vmatprep.subr.mxu0 0.0
      %1338 = vmatpush1.msra.mxu0 0.0
      %1339 = vmatprep.subr.mxu0 0.0
      %1340 = vmatpush1.msra.mxu0 0.0
      %1341 = vmatprep.subr.mxu0 0.0
      %1342 = vmatpush1.msra.mxu0 0.0
      %1343 = vmatprep.subr.mxu0 0.0
      %1344 = vmatpush1.msra.mxu0 0.0
      %1345 = vmatprep.subr.mxu0 0.0
      %1346 = vmatpush1.msra.mxu0 0.0
      %1347 = vmatprep.subr.mxu0 0.0
      %1348 = vmatpush1.msra.mxu0 0.0
      %1349 = vmatprep.subr.mxu0 0.0
      %1350 = vmatpush1.msra.mxu0 0.0
      %1351 = vmatprep.subr.mxu0 0.0
      %1352 = vmatpush1.msra.mxu0 0.0
      %1353 = vmatprep.subr.mxu0 0.0
      %1354 = vmatpush1.msra.mxu0 0.0
      %1355 = vmatprep.subr.mxu0 0.0
      %1356 = vmatpush1.msra.mxu0 0.0
      %1357 = vmatprep.subr.mxu0 0.0
      %1358 = vmatpush1.msra.mxu0 0.0
      %1359 = vmatprep.subr.mxu0 0.0
      %1360 = vmatpush1.msra.mxu0 0.0
      %1361 = vmatprep.subr.mxu0 0.0
      %1362 = vmatpush1.msra.mxu0 0.0
      %1363 = vmatprep.subr.mxu0 0.0
      %1364 = vmatpush1.msra.mxu0 0.0
      %1365 = vmatprep.subr.mxu0 0.0
      %1366 = vmatpush1.msra.mxu0 0.0
      %1367 = vmatprep.subr.mxu0 0.0
      %1368 = vmatpush1.msra.mxu0 0.0
      %1369 = vmatprep.subr.mxu0 0.0
      %1370 = vmatpush1.msra.mxu0 0.0
      %1371 = vmatprep.subr.mxu0 0.0
      %1372 = vmatpush1.msra.mxu0 0.0
      %1373 = vmatprep.subr.mxu0 0.0
      %1374 = vmatpush1.msra.mxu0 0.0
      %1375 = vmatprep.subr.mxu0 0.0
      %1376 = vmatpush1.msra.mxu0 0.0
      %1377 = vmatprep.subr.mxu0 0.0
      %1378 = vmatpush1.msra.mxu0 0.0
      %1379 = vmatprep.subr.mxu0 0.0
      %1380 = vmatpush1.msra.mxu0 0.0
      %1381 = vmatprep.subr.mxu0 0.0
      %1382 = vmatpush1.msra.mxu0 0.0
      %1383 = vmatprep.mubr.f32.mxu0 0.0
      %1384 = vmatmul.mubr.f32.gmra.mrb[0].mxu0 %v1006
      %v1385 = vpop.f32.mrb[0].mxu0
      %v1386 = vadd.f32 %v997, %v1385
      %v1387 = vpop.f32.mrb[0].mxu0
      %v1388 = vadd.f32 %v997, %v1387
      %1389 = vmatprep.mubr.f32.mxu0 0.0
      %1390 = vmatmul.mubr.f32.gmra.mrb[0].mxu0 %v1009
      %v1391 = vpop.f32.mrb[0].mxu0
      %v1392 = vadd.f32 %v1002, %v1391
      %v1393 = vpop.f32.mrb[0].mxu0
      %v1394 = vadd.f32 %v1002, %v1393
      %1395 = vdwg.mxu0
      %1396 = vmatprep.subr.mxu0 %v969
      %1397 = vmatpush1.msra.mxu0 %v968
      %1398 = vmatprep.subr.mxu0 %v985
      %1399 = vmatpush1.msra.mxu0 %v984
      %1400 = vmatprep.subr.mxu0 0.0
      %1401 = vmatpush1.msra.mxu0 0.0
      %1402 = vmatprep.subr.mxu0 0.0
      %1403 = vmatpush1.msra.mxu0 0.0
      %1404 = vmatprep.subr.mxu0 0.0
      %1405 = vmatpush1.msra.mxu0 0.0
      %1406 = vmatprep.subr.mxu0 0.0
      %1407 = vmatpush1.msra.mxu0 0.0
      %1408 = vmatprep.subr.mxu0 0.0
      %1409 = vmatpush1.msra.mxu0 0.0
      %1410 = vmatprep.subr.mxu0 0.0
      %1411 = vmatpush1.msra.mxu0 0.0
      %1412 = vmatprep.subr.mxu0 0.0
      %1413 = vmatpush1.msra.mxu0 0.0
      %1414 = vmatprep.subr.mxu0 0.0
      %1415 = vmatpush1.msra.mxu0 0.0
      %1416 = vmatprep.subr.mxu0 0.0
      %1417 = vmatpush1.msra.mxu0 0.0
      %1418 = vmatprep.subr.mxu0 0.0
      %1419 = vmatpush1.msra.mxu0 0.0
      %1420 = vmatprep.subr.mxu0 0.0
      %1421 = vmatpush1.msra.mxu0 0.0
      %1422 = vmatprep.subr.mxu0 0.0
      %1423 = vmatpush1.msra.mxu0 0.0
      %1424 = vmatprep.subr.mxu0 0.0
      %1425 = vmatpush1.msra.mxu0 0.0
      %1426 = vmatprep.subr.mxu0 0.0
      %1427 = vmatpush1.msra.mxu0 0.0
      %1428 = vmatprep.subr.mxu0 0.0
      %1429 = vmatpush1.msra.mxu0 0.0
      %1430 = vmatprep.subr.mxu0 0.0
      %1431 = vmatpush1.msra.mxu0 0.0
      %1432 = vmatprep.subr.mxu0 0.0
      %1433 = vmatpush1.msra.mxu0 0.0
      %1434 = vmatprep.subr.mxu0 0.0
      %1435 = vmatpush1.msra.mxu0 0.0
      %1436 = vmatprep.subr.mxu0 0.0
      %1437 = vmatpush1.msra.mxu0 0.0
      %1438 = vmatprep.subr.mxu0 0.0
      %1439 = vmatpush1.msra.mxu0 0.0
      %1440 = vmatprep.subr.mxu0 0.0
      %1441 = vmatpush1.msra.mxu0 0.0
      %1442 = vmatprep.subr.mxu0 0.0
      %1443 = vmatpush1.msra.mxu0 0.0
      %1444 = vmatprep.subr.mxu0 0.0
      %1445 = vmatpush1.msra.mxu0 0.0
      %1446 = vmatprep.subr.mxu0 0.0
      %1447 = vmatpush1.msra.mxu0 0.0
      %1448 = vmatprep.subr.mxu0 0.0
      %1449 = vmatpush1.msra.mxu0 0.0
      %1450 = vmatprep.subr.mxu0 0.0
      %1451 = vmatpush1.msra.mxu0 0.0
      %1452 = vmatprep.subr.mxu0 0.0
      %1453 = vmatpush1.msra.mxu0 0.0
      %1454 = vmatprep.subr.mxu0 0.0
      %1455 = vmatpush1.msra.mxu0 0.0
      %1456 = vmatprep.subr.mxu0 0.0
      %1457 = vmatpush1.msra.mxu0 0.0
      %1458 = vmatprep.subr.mxu0 0.0
      %1459 = vmatpush1.msra.mxu0 0.0
      %1460 = vmatprep.mubr.f32.mxu0 0.0
      %1461 = vmatmul.mubr.f32.gmra.mrb[0].mxu0 %v1006
      %v1462 = vpop.f32.mrb[0].mxu0
      %v1463 = vadd.f32 %v997, %v1462
      %v1464 = vpop.f32.mrb[0].mxu0
      %v1465 = vadd.f32 %v997, %v1464
      %1466 = vmatprep.mubr.f32.mxu0 0.0
      %1467 = vmatmul.mubr.f32.gmra.mrb[0].mxu0 %v1009
      %v1468 = vpop.f32.mrb[0].mxu0
      %v1469 = vadd.f32 %v1002, %v1468
      %v1470 = vpop.f32.mrb[0].mxu0
      %v1471 = vadd.f32 %v1002, %v1470
      %1472 = vdwg.mxu0
      %1473 = vmatprep.subr.mxu0 %v971
      %1474 = vmatpush1.msra.mxu0 %v970
      %1475 = vmatprep.subr.mxu0 %v987
      %1476 = vmatpush1.msra.mxu0 %v986
      %1477 = vmatprep.subr.mxu0 0.0
      %1478 = vmatpush1.msra.mxu0 0.0
      %1479 = vmatprep.subr.mxu0 0.0
      %1480 = vmatpush1.msra.mxu0 0.0
      %1481 = vmatprep.subr.mxu0 0.0
      %1482 = vmatpush1.msra.mxu0 0.0
      %1483 = vmatprep.subr.mxu0 0.0
      %1484 = vmatpush1.msra.mxu0 0.0
      %1485 = vmatprep.subr.mxu0 0.0
      %1486 = vmatpush1.msra.mxu0 0.0
      %1487 = vmatprep.subr.mxu0 0.0
      %1488 = vmatpush1.msra.mxu0 0.0
      %1489 = vmatprep.subr.mxu0 0.0
      %1490 = vmatpush1.msra.mxu0 0.0
      %1491 = vmatprep.subr.mxu0 0.0
      %1492 = vmatpush1.msra.mxu0 0.0
      %1493 = vmatprep.subr.mxu0 0.0
      %1494 = vmatpush1.msra.mxu0 0.0
      %1495 = vmatprep.subr.mxu0 0.0
      %1496 = vmatpush1.msra.mxu0 0.0
      %1497 = vmatprep.subr.mxu0 0.0
      %1498 = vmatpush1.msra.mxu0 0.0
      %1499 = vmatprep.subr.mxu0 0.0
      %1500 = vmatpush1.msra.mxu0 0.0
      %1501 = vmatprep.subr.mxu0 0.0
      %1502 = vmatpush1.msra.mxu0 0.0
      %1503 = vmatprep.subr.mxu0 0.0
      %1504 = vmatpush1.msra.mxu0 0.0
      %1505 = vmatprep.subr.mxu0 0.0
      %1506 = vmatpush1.msra.mxu0 0.0
      %1507 = vmatprep.subr.mxu0 0.0
      %1508 = vmatpush1.msra.mxu0 0.0
      %1509 = vmatprep.subr.mxu0 0.0
      %1510 = vmatpush1.msra.mxu0 0.0
      %1511 = vmatprep.subr.mxu0 0.0
      %1512 = vmatpush1.msra.mxu0 0.0
      %1513 = vmatprep.subr.mxu0 0.0
      %1514 = vmatpush1.msra.mxu0 0.0
      %1515 = vmatprep.subr.mxu0 0.0
      %1516 = vmatpush1.msra.mxu0 0.0
      %1517 = vmatprep.subr.mxu0 0.0
      %1518 = vmatpush1.msra.mxu0 0.0
      %1519 = vmatprep.subr.mxu0 0.0
      %1520 = vmatpush1.msra.mxu0 0.0
      %1521 = vmatprep.subr.mxu0 0.0
      %1522 = vmatpush1.msra.mxu0 0.0
      %1523 = vmatprep.subr.mxu0 0.0
      %1524 = vmatpush1.msra.mxu0 0.0
      %1525 = vmatprep.subr.mxu0 0.0
      %1526 = vmatpush1.msra.mxu0 0.0
      %1527 = vmatprep.subr.mxu0 0.0
      %1528 = vmatpush1.msra.mxu0 0.0
      %1529 = vmatprep.subr.mxu0 0.0
      %1530 = vmatpush1.msra.mxu0 0.0
      %1531 = vmatprep.subr.mxu0 0.0
      %1532 = vmatpush1.msra.mxu0 0.0
      %1533 = vmatprep.subr.mxu0 0.0
      %1534 = vmatpush1.msra.mxu0 0.0
      %1535 = vmatprep.subr.mxu0 0.0
      %1536 = vmatpush1.msra.mxu0 0.0
      %1537 = vmatprep.mubr.f32.mxu0 0.0
      %1538 = vmatmul.mubr.f32.gmra.mrb[0].mxu0 %v1006
      %v1539 = vpop.f32.mrb[0].mxu0
      %v1540 = vadd.f32 %v997, %v1539
      %v1541 = vpop.f32.mrb[0].mxu0
      %v1542 = vadd.f32 %v997, %v1541
      %1543 = vmatprep.mubr.f32.mxu0 0.0
      %1544 = vmatmul.mubr.f32.gmra.mrb[0].mxu0 %v1009
      %v1545 = vpop.f32.mrb[0].mxu0
      %v1546 = vadd.f32 %v1002, %v1545
      %v1547 = vpop.f32.mrb[0].mxu0
      %v1548 = vadd.f32 %v1002, %v1547
      %1549 = vdwg.mxu0
      %1550 = vmatprep.subr.mxu0 %v973
      %1551 = vmatpush1.msra.mxu0 %v972
      %1552 = vmatprep.subr.mxu0 %v989
      %1553 = vmatpush1.msra.mxu0 %v988
      %1554 = vmatprep.subr.mxu0 0.0
      %1555 = vmatpush1.msra.mxu0 0.0
      %1556 = vmatprep.subr.mxu0 0.0
      %1557 = vmatpush1.msra.mxu0 0.0
      %1558 = vmatprep.subr.mxu0 0.0
      %1559 = vmatpush1.msra.mxu0 0.0
      %1560 = vmatprep.subr.mxu0 0.0
      %1561 = vmatpush1.msra.mxu0 0.0
      %1562 = vmatprep.subr.mxu0 0.0
      %1563 = vmatpush1.msra.mxu0 0.0
      %1564 = vmatprep.subr.mxu0 0.0
      %1565 = vmatpush1.msra.mxu0 0.0
      %1566 = vmatprep.subr.mxu0 0.0
      %1567 = vmatpush1.msra.mxu0 0.0
      %1568 = vmatprep.subr.mxu0 0.0
      %1569 = vmatpush1.msra.mxu0 0.0
      %1570 = vmatprep.subr.mxu0 0.0
      %1571 = vmatpush1.msra.mxu0 0.0
      %1572 = vmatprep.subr.mxu0 0.0
      %1573 = vmatpush1.msra.mxu0 0.0
      %1574 = vmatprep.subr.mxu0 0.0
      %1575 = vmatpush1.msra.mxu0 0.0
      %1576 = vmatprep.subr.mxu0 0.0
      %1577 = vmatpush1.msra.mxu0 0.0
      %1578 = vmatprep.subr.mxu0 0.0
      %1579 = vmatpush1.msra.mxu0 0.0
      %1580 = vmatprep.subr.mxu0 0.0
      %1581 = vmatpush1.msra.mxu0 0.0
      %1582 = vmatprep.subr.mxu0 0.0
      %1583 = vmatpush1.msra.mxu0 0.0
      %1584 = vmatprep.subr.mxu0 0.0
      %1585 = vmatpush1.msra.mxu0 0.0
      %1586 = vmatprep.subr.mxu0 0.0
      %1587 = vmatpush1.msra.mxu0 0.0
      %1588 = vmatprep.subr.mxu0 0.0
      %1589 = vmatpush1.msra.mxu0 0.0
      %1590 = vmatprep.subr.mxu0 0.0
      %1591 = vmatpush1.msra.mxu0 0.0
      %1592 = vmatprep.subr.mxu0 0.0
      %1593 = vmatpush1.msra.mxu0 0.0
      %1594 = vmatprep.subr.mxu0 0.0
      %1595 = vmatpush1.msra.mxu0 0.0
      %1596 = vmatprep.subr.mxu0 0.0
      %1597 = vmatpush1.msra.mxu0 0.0
      %1598 = vmatprep.subr.mxu0 0.0
      %1599 = vmatpush1.msra.mxu0 0.0
      %1600 = vmatprep.subr.mxu0 0.0
      %1601 = vmatpush1.msra.mxu0 0.0
      %1602 = vmatprep.subr.mxu0 0.0
      %1603 = vmatpush1.msra.mxu0 0.0
      %1604 = vmatprep.subr.mxu0 0.0
      %1605 = vmatpush1.msra.mxu0 0.0
      %1606 = vmatprep.subr.mxu0 0.0
      %1607 = vmatpush1.msra.mxu0 0.0
      %1608 = vmatprep.subr.mxu0 0.0
      %1609 = vmatpush1.msra.mxu0 0.0
      %1610 = vmatprep.subr.mxu0 0.0
      %1611 = vmatpush1.msra.mxu0 0.0
      %1612 = vmatprep.subr.mxu0 0.0
      %1613 = vmatpush1.msra.mxu0 0.0
      %1614 = vmatprep.mubr.f32.mxu0 0.0
      %1615 = vmatmul.mubr.f32.gmra.mrb[0].mxu0 %v1006
      %v1616 = vpop.f32.mrb[0].mxu0
      %v1617 = vadd.f32 %v997, %v1616
      %v1618 = vpop.f32.mrb[0].mxu0
      %v1619 = vadd.f32 %v997, %v1618
      %1620 = vmatprep.mubr.f32.mxu0 0.0
      %1621 = vmatmul.mubr.f32.gmra.mrb[0].mxu0 %v1009
      %v1622 = vpop.f32.mrb[0].mxu0
      %v1623 = vadd.f32 %v1002, %v1622
      %v1624 = vpop.f32.mrb[0].mxu0
      %v1625 = vadd.f32 %v1002, %v1624
      %1626 = vdwg.mxu0
      %v1627 = vmax.f32 %v1078, 0.0
      %v1628 = vmax.f32 %v1080, 0.0
      %v1629 = vmax.f32 %v1155, 0.0
      %v1630 = vmax.f32 %v1157, 0.0
      %v1631 = vmax.f32 %v1232, 0.0
      %v1632 = vmax.f32 %v1234, 0.0
      %v1633 = vmax.f32 %v1309, 0.0
      %v1634 = vmax.f32 %v1311, 0.0
      %v1635 = vmax.f32 %v1386, 0.0
      %v1636 = vmax.f32 %v1388, 0.0
      %v1637 = vmax.f32 %v1463, 0.0
      %v1638 = vmax.f32 %v1465, 0.0
      %v1639 = vmax.f32 %v1540, 0.0
      %v1640 = vmax.f32 %v1542, 0.0
      %v1641 = vmax.f32 %v1617, 0.0
      %v1642 = vmax.f32 %v1619, 0.0
      %v1643 = vmax.f32 %v1084, 0.0
      %v1644 = vmax.f32 %v1086, 0.0
      %v1645 = vmax.f32 %v1161, 0.0
      %v1646 = vmax.f32 %v1163, 0.0
      %v1647 = vmax.f32 %v1238, 0.0
      %v1648 = vmax.f32 %v1240, 0.0
      %v1649 = vmax.f32 %v1315, 0.0
      %v1650 = vmax.f32 %v1317, 0.0
      %v1651 = vmax.f32 %v1392, 0.0
      %v1652 = vmax.f32 %v1394, 0.0
      %v1653 = vmax.f32 %v1469, 0.0
      %v1654 = vmax.f32 %v1471, 0.0
      %v1655 = vmax.f32 %v1546, 0.0
      %v1656 = vmax.f32 %v1548, 0.0
      %v1657 = vmax.f32 %v1623, 0.0
      %v1658 = vmax.f32 %v1625, 0.0
      %1659 = vst [vmem:[%s262] sm:$0xff] %v1627
      %1660 = vst [vmem:[%s262 + $0x8] sm:$0xff] %v1628
      %1661 = vst [vmem:[%s262 + $0x10] sm:$0xff] %v1629
      %1662 = vst [vmem:[%s262 + $0x18] sm:$0xff] %v1630
      %1663 = vst [vmem:[%s262 + $0x20] sm:$0xff] %v1631
      %1664 = vst [vmem:[%s262 + $0x28] sm:$0xff] %v1632
      %1665 = vst [vmem:[%s262 + $0x30] sm:$0xff] %v1633
      %1666 = vst [vmem:[%s262 + $0x38] sm:$0xff] %v1634
      %1667 = vst [vmem:[%s262 + $0x40] sm:$0xff] %v1635
      %1668 = vst [vmem:[%s262 + $0x48] sm:$0xff] %v1636
      %1669 = vst [vmem:[%s262 + $0x50] sm:$0xff] %v1637
      %1670 = vst [vmem:[%s262 + $0x58] sm:$0xff] %v1638
      %1671 = vst [vmem:[%s262 + $0x60] sm:$0xff] %v1639
      %1672 = vst [vmem:[%s262 + $0x68] sm:$0xff] %v1640
      %1673 = vst [vmem:[%s262 + $0x70] sm:$0xff] %v1641
      %1674 = vst [vmem:[%s262 + $0x78] sm:$0xff] %v1642
      %1675 = vst [vmem:[%s262 + $0x80] sm:$0xff] %v1643
      %1676 = vst [vmem:[%s262 + $0x88] sm:$0xff] %v1644
      %1677 = vst [vmem:[%s262 + $0x90] sm:$0xff] %v1645
      %1678 = vst [vmem:[%s262 + $0x98] sm:$0xff] %v1646
      %1679 = vst [vmem:[%s262 + $0xa0] sm:$0xff] %v1647
      %1680 = vst [vmem:[%s262 + $0xa8] sm:$0xff] %v1648
      %1681 = vst [vmem:[%s262 + $0xb0] sm:$0xff] %v1649
      %1682 = vst [vmem:[%s262 + $0xb8] sm:$0xff] %v1650
      %1683 = vst [vmem:[%s262 + $0xc0] sm:$0xff] %v1651
      %1684 = vst [vmem:[%s262 + $0xc8] sm:$0xff] %v1652
      %1685 = vst [vmem:[%s262 + $0xd0] sm:$0xff] %v1653
      %1686 = vst [vmem:[%s262 + $0xd8] sm:$0xff] %v1654
      %1687 = vst [vmem:[%s262 + $0xe0] sm:$0xff] %v1655
      %1688 = vst [vmem:[%s262 + $0xe8] sm:$0xff] %v1656
      %1689 = vst [vmem:[%s262 + $0xf0] sm:$0xff] %v1657
      %1690 = vst [vmem:[%s262 + $0xf8] sm:$0xff] %v1658
      %s1691 = smul.u32 16, %s21
      %p1692 = scmp.lt.s32.totalorder %s20, 1
      %s1693 = scalar_select %p1692, %s20, 1
      %p1694 = scmp.lt.s32.totalorder %s1691, 15
      %s1695 = scalar_select %p1694, %s1691, 15
      %s1696 = smul.addr %s1693, 32
      %s1697 = sadd.s32 %s1695, %s1696
      %s1698 = smul.addr %s1697, 8
      %s1699 = scalar_lea.vmem %s5, %s1698
      // Predicated region
      $region41: #{double_conv.1} parent=39 // pred_check
        %p1700 = pneg %p160
      $region42: #{double_conv.1} parent=39 // pred_check_branch
        %1702 = sbr.rel (%p1700) target = $region44
      $region43: #{double_conv.1} parent=39 // pred_region
        %s1703 = smul.u32 16, %s21
      $region44: #{double_conv.1} parent=39 // pred_fallthru
        _
    $region40: #{double_conv.1} parent=5 // pred_fallthru
      _
    %p1704 = scmp.le.s32.totalorder 2, %s11
    // Predicated region
    $region45: #{double_conv.1} parent=5 // pred_check
      %p1705 = pneg %p1704
    $region46: #{double_conv.1} parent=5 // pred_check_branch
      %1707 = sbr.rel (%p1705) target = $region48
    $region47: #{double_conv.1} parent=5 // pred_region
      %s1708 = ssub.s32 %s11, 2
      // Predicated region
      $region49: #{double_conv.1} parent=47 // pred_check
        %p1709 = pneg %p166
      $region50: #{double_conv.1} parent=47 // pred_check_branch
        %1711 = sbr.rel (%p1709) target = $region52
      $region51: #{double_conv.1} parent=47 // pred_region
        %s1712 = smul.u32 16, %s23
        %p1713 = scmp.lt.s32.totalorder %s22, 1
        %s1714 = scalar_select %p1713, %s22, 1
        %p1715 = scmp.lt.s32.totalorder %s1712, 15
        %s1716 = scalar_select %p1715, %s1712, 15
        %s1717 = smul.addr %s1714, 32
        %s1718 = sadd.s32 %s1716, %s1717
        %s1719 = smul.addr %s1718, 8
        %s1720 = scalar_lea.vmem %s5, %s1719
      $region52: #{double_conv.1} parent=47 // pred_fallthru
        _
    $region48: #{double_conv.1} parent=5 // pred_fallthru
      _
  $region6: #{double_conv.1} parent=0 // loop_footer
    %s15 = sadd.s32 1, %s11
  $region7: #{double_conv.1} parent=0 // loop_footer_branch
    %10 = sbr.rel target = $region3
  $region8: #{double_conv.1} parent=0 // loop_exit
    _

</llo_original>
